<compile_context>
chip_gen: v7x
topology: tpu7x:2x2x1
jax: 0.10.0
libtpu: 0.0.40
codegen_flags: <defaults>
</compile_context>

<pallas_src>
import numpy as np
import jax
import jax.numpy as jnp
from jax.experimental import pallas as pl
from jax.experimental.pallas import tpu as pltpu


# ----------------------------------------------------------------------------
# Kernel (single invocation, no grid; everything VMEM-resident, ~0.6 MiB).
#   inputs : xf     (T*Bp, Dp)   time-major, padded, flattened input sequence
#            w_lin  (Dp, Rp)     linear weight (pre-transposed, padded)
#            b_lin  (1, Rp)
#            w_ih   (Rp, 3*Hp)   fused per-gate GRU input weights [r | z | n]
#            b_ih   (1, 3*Hp)    fused input biases (b_hh[r], b_hh[z] folded in)
#            w_hh   (Hp, 3*Hp)   fused per-gate GRU hidden weights [r | z | n]
#            b_hhn  (1, 3*Hp)    b_hh[n] in the n slot, zeros in r/z slots
#   output : hn     (Bp, Hp)     final hidden state (lane-dense slab)
#   scratch: gi     (T, Bp, 3*Hp) precomputed gate pre-activations
# ----------------------------------------------------------------------------
def _firstnet_kernel(xf_ref, wlin_ref, blin_ref, wih_ref, bih_ref,
                     whh_ref, bhhn_ref, out_ref, gi_scr):
    T, Bp, G = gi_scr.shape
    Hp = G // 3

    # ---- hoisted, non-recurrent part: batched MXU passes over all T steps --
    lin = jnp.dot(xf_ref[...], wlin_ref[...],
                  preferred_element_type=jnp.float32) + blin_ref[...]
    # Dropout(p=0.3) in eval mode: identity.
    gi_scr[...] = (jnp.dot(lin, wih_ref[...],
                           preferred_element_type=jnp.float32)
                   + bih_ref[...]).reshape(T, Bp, G)

    # ---- recurrent part: one fused h @ W_hh + gate math per step -----------
    whh = whh_ref[...]
    bhhn = jnp.broadcast_to(bhhn_ref[...], (Bp, G))   # broadcast hoisted

    def step(t, h):
        gh = jnp.dot(h, whh, preferred_element_type=jnp.float32) + bhhn
        gi = gi_scr[t]
        # r|z are adjacent 128-lane slots: one EUP activation over the slab.
        # sigmoid(x) == 0.5*(1 + tanh(0.5*x))  (1 EUP push vs exp+recip).
        rz = 0.5 * (1.0 + jnp.tanh(0.5 * (gi[:, :2 * Hp] + gh[:, :2 * Hp])))
        r = rz[:, :Hp]
        z = rz[:, Hp:2 * Hp]
        n = jnp.tanh(gi[:, 2 * Hp:] + r * gh[:, 2 * Hp:])
        return n + z * (h - n)                         # == (1-z)*n + z*h

    h_last = jax.lax.fori_loop(0, T, step,
                               jnp.zeros((Bp, Hp), jnp.float32),
                               unroll=True)
    out_ref[...] = h_last                              # lane-dense (8,128) store


def _round_up(n, m):
    return ((n + m - 1) // m) * m


# ----------------------------------------------------------------------------
# One-time weight preprocessing (call once, reuse for every forward call).
# ----------------------------------------------------------------------------
def prepare_params(params):
    w_lin, b_lin, w_ih, b_ih, w_hh, b_hh = params
    R, D = w_lin.shape            # rnn_dim, input_dim
    H = w_hh.shape[1]             # state_dim
    Dp = _round_up(D, 128)
    Rp = _round_up(R, 128)
    Hp = _round_up(H, 128)
    f32 = jnp.float32

    def pad2(a, rows, cols):
        a = jnp.asarray(a, f32)
        return jnp.pad(a, ((0, rows - a.shape[0]), (0, cols - a.shape[1])))

    wlin_p = pad2(w_lin.T, Dp, Rp)                       # (Dp, Rp)
    blin_p = pad2(b_lin.reshape(1, R), 1, Rp)            # (1, Rp)

    # Fused per-gate weights (PyTorch gate order r, z, n), each gate padded
    # into its own 128-lane slot so in-kernel gate slices stay lane-aligned.
    wih_f = jnp.concatenate(
        [pad2(w_ih[g * H:(g + 1) * H, :].T, Rp, Hp) for g in range(3)],
        axis=1)                                          # (Rp, 3*Hp)
    whh_f = jnp.concatenate(
        [pad2(w_hh[g * H:(g + 1) * H, :].T, Hp, Hp) for g in range(3)],
        axis=1)                                          # (Hp, 3*Hp)

    # Fold b_hh[r], b_hh[z] into the input-side biases (always summed);
    # b_hh[n] stays separate (scaled by r) in its own slot of a (1, 3*Hp) row.
    bih_f = jnp.concatenate([
        pad2((b_ih[0:H] + b_hh[0:H]).reshape(1, H), 1, Hp),
        pad2((b_ih[H:2 * H] + b_hh[H:2 * H]).reshape(1, H), 1, Hp),
        pad2(b_ih[2 * H:3 * H].reshape(1, H), 1, Hp),
    ], axis=1)                                           # (1, 3*Hp)
    bhhn = jnp.concatenate([
        jnp.zeros((1, 2 * Hp), f32),
        pad2(b_hh[2 * H:3 * H].reshape(1, H), 1, Hp),
    ], axis=1)                                           # (1, 3*Hp)

    dims = {"D": D, "H": H, "Dp": Dp, "Hp": Hp}
    return (wlin_p, blin_p, wih_f, bih_f, whh_f, bhhn), dims


def firstnet_forward(x, prepared):
    """x: (B, T, D) float32 (batch_first). Returns hn.transpose(0,1): (B, 1, H)."""
    (wlin_p, blin_p, wih_f, bih_f, whh_f, bhhn), dims = prepared
    B, T, D = x.shape
    assert D == dims["D"]
    Dp, Hp, H = dims["Dp"], dims["Hp"], dims["H"]
    Bp = _round_up(B, 8)
    f32 = jnp.float32

    # Time-major, padded to full (8 sublane, 128 lane) tiles, flattened over (T,B).
    x_t = jnp.transpose(x.astype(f32), (1, 0, 2))              # (T, B, D)
    x_p = jnp.pad(x_t, ((0, 0), (0, Bp - B), (0, Dp - D)))     # (T, Bp, Dp)
    xf = x_p.reshape(T * Bp, Dp)

    vmem = pl.BlockSpec(memory_space=pltpu.MemorySpace.VMEM)   # whole array in VMEM

    h_pad = pl.pallas_call(
        _firstnet_kernel,
        out_shape=jax.ShapeDtypeStruct((Bp, Hp), f32),
        in_specs=[vmem] * 7,
        out_specs=vmem,
        scratch_shapes=[pltpu.VMEM((T, Bp, 3 * Hp), f32)],
    )(xf, wlin_p, blin_p, wih_f, bih_f, whh_f, bhhn)

    # PyTorch hn is (num_layers=1, B, H); hn.transpose(0, 1) -> (B, 1, H).
    return h_pad[:B, :H].reshape(B, 1, H)


# ----------------------------------------------------------------------------
# Pure-JAX reference (mirrors the PyTorch math) for a sanity check.
# ----------------------------------------------------------------------------
def firstnet_reference(x, params):
    w_lin, b_lin, w_ih, b_ih, w_hh, b_hh = params
    H = w_hh.shape[1]
    B, T, _ = x.shape
    h = jnp.zeros((B, H), jnp.float32)
    for t in range(T):
        rnn_in = x[:, t, :] @ w_lin.T + b_lin
        gi = rnn_in @ w_ih.T + b_ih
        gh = h @ w_hh.T + b_hh
        r = jax.nn.sigmoid(gi[:, :H] + gh[:, :H])
        z = jax.nn.sigmoid(gi[:, H:2 * H] + gh[:, H:2 * H])
        n = jnp.tanh(gi[:, 2 * H:] + r * gh[:, 2 * H:])
        h = (1.0 - z) * n + z * h
    return h.reshape(B, 1, H)


def init_params(key, input_dim, rnn_dim, state_dim):
    ks = jax.random.split(key, 6)
    klin = 1.0 / np.sqrt(input_dim)
    kgru = 1.0 / np.sqrt(state_dim)
    u = lambda k, shape, s: jax.random.uniform(k, shape, jnp.float32, -s, s)
    w_lin = u(ks[0], (rnn_dim, input_dim), klin)
    b_lin = u(ks[1], (rnn_dim,), klin)
    w_ih = u(ks[2], (3 * state_dim, rnn_dim), kgru)
    b_ih = u(ks[3], (3 * state_dim,), kgru)
    w_hh = u(ks[4], (3 * state_dim, state_dim), kgru)
    b_hh = u(ks[5], (3 * state_dim,), kgru)
    return (w_lin, b_lin, w_ih, b_ih, w_hh, b_hh)


if __name__ == "__main__":
    # Shapes consistent with the spec: x = torch.randn(3, 5, 10).
    B, T = 3, 5
    input_dim, rnn_dim, state_dim = 10, 20, 32

    root = jax.random.PRNGKey(0)
    kx, kp = jax.random.split(root)
    x = jax.random.normal(kx, (B, T, input_dim), dtype=jnp.float32)
    params = init_params(kp, input_dim, rnn_dim, state_dim)

    # One-time weight preprocessing (hoisted out of the per-call path),
    # then a single jit-compiled forward that only pads x and calls the kernel.
    prepared = prepare_params(params)
    fwd = jax.jit(lambda xx: firstnet_forward(xx, prepared))

    out = jax.block_until_ready(fwd(x))

    ref = jax.block_until_ready(firstnet_reference(x, params))
    assert out.shape == (B, 1, state_dim), out.shape
    np.testing.assert_allclose(np.asarray(out), np.asarray(ref),
                               rtol=1e-5, atol=1e-5)
    print("KERNEL_OK")
</pallas_src>

<mosaic_0001>
module attributes {stable_mosaic.version = 11 : i64} {
  func.func @_firstnet_kernel(%arg0: memref<40x128xf32, #tpu.memory_space<vmem>>, %arg1: memref<128x128xf32, #tpu.memory_space<vmem>>, %arg2: memref<1x128xf32, #tpu.memory_space<vmem>>, %arg3: memref<128x384xf32, #tpu.memory_space<vmem>>, %arg4: memref<1x384xf32, #tpu.memory_space<vmem>>, %arg5: memref<128x384xf32, #tpu.memory_space<vmem>>, %arg6: memref<1x384xf32, #tpu.memory_space<vmem>>, %arg7: memref<8x128xf32, #tpu.memory_space<vmem>>, %arg8: memref<5x8x384xf32, #tpu.memory_space<vmem>>) attributes {dimension_semantics = [], scalar_prefetch = 0 : i64, scratch_operands = 1 : i64, tpu.core_type = #tpu.core_type<tc>} {
    %c0 = arith.constant 0 : index
    %c0_0 = arith.constant 0 : index
    %0 = vector.load %arg0[%c0, %c0_0] : memref<40x128xf32, #tpu.memory_space<vmem>>, vector<40x128xf32>
    %c0_1 = arith.constant 0 : index
    %c0_2 = arith.constant 0 : index
    %1 = vector.load %arg1[%c0_1, %c0_2] : memref<128x128xf32, #tpu.memory_space<vmem>>, vector<128x128xf32>
    %cst = arith.constant dense<0.000000e+00> : vector<40x128xf32>
    %2 = tpu.matmul %0, %1, %cst {dimension_numbers = #tpu.dot_dimension_numbers<[1], [0], [0], [1], [0, 0, 1, 1], [], []>} : vector<40x128xf32>, vector<128x128xf32>, vector<40x128xf32> -> vector<40x128xf32>
    %c0_3 = arith.constant 0 : index
    %c0_4 = arith.constant 0 : index
    %3 = vector.load %arg2[%c0_3, %c0_4] : memref<1x128xf32, #tpu.memory_space<vmem>>, vector<1x128xf32>
    %4 = vector.broadcast %3 : vector<1x128xf32> to vector<40x128xf32>
    %5 = arith.addf %2, %4 : vector<40x128xf32>
    %c0_5 = arith.constant 0 : index
    %c0_6 = arith.constant 0 : index
    %6 = vector.load %arg3[%c0_5, %c0_6] : memref<128x384xf32, #tpu.memory_space<vmem>>, vector<128x384xf32>
    %cst_7 = arith.constant dense<0.000000e+00> : vector<40x384xf32>
    %7 = tpu.matmul %5, %6, %cst_7 {dimension_numbers = #tpu.dot_dimension_numbers<[1], [0], [0], [1], [0, 0, 1, 1], [], []>} : vector<40x128xf32>, vector<128x384xf32>, vector<40x384xf32> -> vector<40x384xf32>
    %c0_8 = arith.constant 0 : index
    %c0_9 = arith.constant 0 : index
    %8 = vector.load %arg4[%c0_8, %c0_9] : memref<1x384xf32, #tpu.memory_space<vmem>>, vector<1x384xf32>
    %9 = vector.broadcast %8 : vector<1x384xf32> to vector<40x384xf32>
    %10 = arith.addf %7, %9 : vector<40x384xf32>
    %11 = vector.shape_cast %10 : vector<40x384xf32> to vector<5x8x384xf32>
    %c0_10 = arith.constant 0 : index
    %c0_11 = arith.constant 0 : index
    %c0_12 = arith.constant 0 : index
    %12 = vector.load %arg8[%c0_10, %c0_11, %c0_12] : memref<5x8x384xf32, #tpu.memory_space<vmem>>, vector<5x8x384xf32>
    tpu.vector_store %arg8[%c0_10, %c0_11, %c0_12], %11 {strides = array<i32>} : memref<5x8x384xf32, #tpu.memory_space<vmem>>, vector<5x8x384xf32>,
    %c0_13 = arith.constant 0 : index
    %c0_14 = arith.constant 0 : index
    %13 = vector.load %arg5[%c0_13, %c0_14] : memref<128x384xf32, #tpu.memory_space<vmem>>, vector<128x384xf32>
    %c0_15 = arith.constant 0 : index
    %c0_16 = arith.constant 0 : index
    %14 = vector.load %arg6[%c0_15, %c0_16] : memref<1x384xf32, #tpu.memory_space<vmem>>, vector<1x384xf32>
    %15 = vector.shape_cast %14 : vector<1x384xf32> to vector<1x384xf32>
    %16 = vector.broadcast %15 : vector<1x384xf32> to vector<8x384xf32>
    %cst_17 = arith.constant 0.000000e+00 : f32
    %17 = vector.broadcast %cst_17 : f32 to vector<8x128xf32>
    %c0_i32 = arith.constant 0 : i32
    %cst_18 = arith.constant dense<0.000000e+00> : vector<8x384xf32>
    %18 = tpu.matmul %17, %13, %cst_18 {dimension_numbers = #tpu.dot_dimension_numbers<[1], [0], [0], [1], [0, 0, 1, 1], [], []>} : vector<8x128xf32>, vector<128x384xf32>, vector<8x384xf32> -> vector<8x384xf32>
    %19 = arith.addf %18, %16 : vector<8x384xf32>
    %20 = arith.index_cast %c0_i32 : i32 to index
    %c0_19 = arith.constant 0 : index
    %c0_20 = arith.constant 0 : index
    %21 = vector.load %arg8[%20, %c0_19, %c0_20] : memref<5x8x384xf32, #tpu.memory_space<vmem>>, vector<1x8x384xf32>
    %22 = vector.shape_cast %21 : vector<1x8x384xf32> to vector<8x384xf32>
    %23 = vector.extract_strided_slice %22 {offsets = [0, 0], sizes = [8, 256], strides = [1, 1]} : vector<8x384xf32> to vector<8x256xf32>
    %24 = vector.extract_strided_slice %19 {offsets = [0, 0], sizes = [8, 256], strides = [1, 1]} : vector<8x384xf32> to vector<8x256xf32>
    %25 = arith.addf %23, %24 : vector<8x256xf32>
    %cst_21 = arith.constant 5.000000e-01 : f32
    %26 = vector.broadcast %cst_21 : f32 to vector<8x256xf32>
    %27 = arith.mulf %26, %25 : vector<8x256xf32>
    %28 = math.tanh %27 : vector<8x256xf32>
    %cst_22 = arith.constant 1.000000e+00 : f32
    %29 = vector.broadcast %cst_22 : f32 to vector<8x256xf32>
    %30 = arith.addf %29, %28 : vector<8x256xf32>
    %cst_23 = arith.constant 5.000000e-01 : f32
    %31 = vector.broadcast %cst_23 : f32 to vector<8x256xf32>
    %32 = arith.mulf %31, %30 : vector<8x256xf32>
    %33 = vector.extract_strided_slice %32 {offsets = [0, 0], sizes = [8, 128], strides = [1, 1]} : vector<8x256xf32> to vector<8x128xf32>
    %34 = vector.extract_strided_slice %32 {offsets = [0, 128], sizes = [8, 128], strides = [1, 1]} : vector<8x256xf32> to vector<8x128xf32>
    %35 = vector.extract_strided_slice %22 {offsets = [0, 256], sizes = [8, 128], strides = [1, 1]} : vector<8x384xf32> to vector<8x128xf32>
    %36 = vector.extract_strided_slice %19 {offsets = [0, 256], sizes = [8, 128], strides = [1, 1]} : vector<8x384xf32> to vector<8x128xf32>
    %37 = arith.mulf %33, %36 : vector<8x128xf32>
    %38 = arith.addf %35, %37 : vector<8x128xf32>
    %39 = math.tanh %38 : vector<8x128xf32>
    %40 = arith.subf %17, %39 : vector<8x128xf32>
    %41 = arith.mulf %34, %40 : vector<8x128xf32>
    %42 = arith.addf %39, %41 : vector<8x128xf32>
    %c1_i32 = arith.constant 1 : i32
    %cst_24 = arith.constant dense<0.000000e+00> : vector<8x384xf32>
    %43 = tpu.matmul %42, %13, %cst_24 {dimension_numbers = #tpu.dot_dimension_numbers<[1], [0], [0], [1], [0, 0, 1, 1], [], []>} : vector<8x128xf32>, vector<128x384xf32>, vector<8x384xf32> -> vector<8x384xf32>
    %44 = arith.addf %43, %16 : vector<8x384xf32>
    %45 = arith.index_cast %c1_i32 : i32 to index
    %c0_25 = arith.constant 0 : index
    %c0_26 = arith.constant 0 : index
    %46 = vector.load %arg8[%45, %c0_25, %c0_26] : memref<5x8x384xf32, #tpu.memory_space<vmem>>, vector<1x8x384xf32>
    %47 = vector.shape_cast %46 : vector<1x8x384xf32> to vector<8x384xf32>
    %48 = vector.extract_strided_slice %47 {offsets = [0, 0], sizes = [8, 256], strides = [1, 1]} : vector<8x384xf32> to vector<8x256xf32>
    %49 = vector.extract_strided_slice %44 {offsets = [0, 0], sizes = [8, 256], strides = [1, 1]} : vector<8x384xf32> to vector<8x256xf32>
    %50 = arith.addf %48, %49 : vector<8x256xf32>
    %cst_27 = arith.constant 5.000000e-01 : f32
    %51 = vector.broadcast %cst_27 : f32 to vector<8x256xf32>
    %52 = arith.mulf %51, %50 : vector<8x256xf32>
    %53 = math.tanh %52 : vector<8x256xf32>
    %cst_28 = arith.constant 1.000000e+00 : f32
    %54 = vector.broadcast %cst_28 : f32 to vector<8x256xf32>
    %55 = arith.addf %54, %53 : vector<8x256xf32>
    %cst_29 = arith.constant 5.000000e-01 : f32
    %56 = vector.broadcast %cst_29 : f32 to vector<8x256xf32>
    %57 = arith.mulf %56, %55 : vector<8x256xf32>
    %58 = vector.extract_strided_slice %57 {offsets = [0, 0], sizes = [8, 128], strides = [1, 1]} : vector<8x256xf32> to vector<8x128xf32>
    %59 = vector.extract_strided_slice %57 {offsets = [0, 128], sizes = [8, 128], strides = [1, 1]} : vector<8x256xf32> to vector<8x128xf32>
    %60 = vector.extract_strided_slice %47 {offsets = [0, 256], sizes = [8, 128], strides = [1, 1]} : vector<8x384xf32> to vector<8x128xf32>
    %61 = vector.extract_strided_slice %44 {offsets = [0, 256], sizes = [8, 128], strides = [1, 1]} : vector<8x384xf32> to vector<8x128xf32>
    %62 = arith.mulf %58, %61 : vector<8x128xf32>
    %63 = arith.addf %60, %62 : vector<8x128xf32>
    %64 = math.tanh %63 : vector<8x128xf32>
    %65 = arith.subf %42, %64 : vector<8x128xf32>
    %66 = arith.mulf %59, %65 : vector<8x128xf32>
    %67 = arith.addf %64, %66 : vector<8x128xf32>
    %c2_i32 = arith.constant 2 : i32
    %cst_30 = arith.constant dense<0.000000e+00> : vector<8x384xf32>
    %68 = tpu.matmul %67, %13, %cst_30 {dimension_numbers = #tpu.dot_dimension_numbers<[1], [0], [0], [1], [0, 0, 1, 1], [], []>} : vector<8x128xf32>, vector<128x384xf32>, vector<8x384xf32> -> vector<8x384xf32>
    %69 = arith.addf %68, %16 : vector<8x384xf32>
    %70 = arith.index_cast %c2_i32 : i32 to index
    %c0_31 = arith.constant 0 : index
    %c0_32 = arith.constant 0 : index
    %71 = vector.load %arg8[%70, %c0_31, %c0_32] : memref<5x8x384xf32, #tpu.memory_space<vmem>>, vector<1x8x384xf32>
    %72 = vector.shape_cast %71 : vector<1x8x384xf32> to vector<8x384xf32>
    %73 = vector.extract_strided_slice %72 {offsets = [0, 0], sizes = [8, 256], strides = [1, 1]} : vector<8x384xf32> to vector<8x256xf32>
    %74 = vector.extract_strided_slice %69 {offsets = [0, 0], sizes = [8, 256], strides = [1, 1]} : vector<8x384xf32> to vector<8x256xf32>
    %75 = arith.addf %73, %74 : vector<8x256xf32>
    %cst_33 = arith.constant 5.000000e-01 : f32
    %76 = vector.broadcast %cst_33 : f32 to vector<8x256xf32>
    %77 = arith.mulf %76, %75 : vector<8x256xf32>
    %78 = math.tanh %77 : vector<8x256xf32>
    %cst_34 = arith.constant 1.000000e+00 : f32
    %79 = vector.broadcast %cst_34 : f32 to vector<8x256xf32>
    %80 = arith.addf %79, %78 : vector<8x256xf32>
    %cst_35 = arith.constant 5.000000e-01 : f32
    %81 = vector.broadcast %cst_35 : f32 to vector<8x256xf32>
    %82 = arith.mulf %81, %80 : vector<8x256xf32>
    %83 = vector.extract_strided_slice %82 {offsets = [0, 0], sizes = [8, 128], strides = [1, 1]} : vector<8x256xf32> to vector<8x128xf32>
    %84 = vector.extract_strided_slice %82 {offsets = [0, 128], sizes = [8, 128], strides = [1, 1]} : vector<8x256xf32> to vector<8x128xf32>
    %85 = vector.extract_strided_slice %72 {offsets = [0, 256], sizes = [8, 128], strides = [1, 1]} : vector<8x384xf32> to vector<8x128xf32>
    %86 = vector.extract_strided_slice %69 {offsets = [0, 256], sizes = [8, 128], strides = [1, 1]} : vector<8x384xf32> to vector<8x128xf32>
    %87 = arith.mulf %83, %86 : vector<8x128xf32>
    %88 = arith.addf %85, %87 : vector<8x128xf32>
    %89 = math.tanh %88 : vector<8x128xf32>
    %90 = arith.subf %67, %89 : vector<8x128xf32>
    %91 = arith.mulf %84, %90 : vector<8x128xf32>
    %92 = arith.addf %89, %91 : vector<8x128xf32>
    %c3_i32 = arith.constant 3 : i32
    %cst_36 = arith.constant dense<0.000000e+00> : vector<8x384xf32>
    %93 = tpu.matmul %92, %13, %cst_36 {dimension_numbers = #tpu.dot_dimension_numbers<[1], [0], [0], [1], [0, 0, 1, 1], [], []>} : vector<8x128xf32>, vector<128x384xf32>, vector<8x384xf32> -> vector<8x384xf32>
    %94 = arith.addf %93, %16 : vector<8x384xf32>
    %95 = arith.index_cast %c3_i32 : i32 to index
    %c0_37 = arith.constant 0 : index
    %c0_38 = arith.constant 0 : index
    %96 = vector.load %arg8[%95, %c0_37, %c0_38] : memref<5x8x384xf32, #tpu.memory_space<vmem>>, vector<1x8x384xf32>
    %97 = vector.shape_cast %96 : vector<1x8x384xf32> to vector<8x384xf32>
    %98 = vector.extract_strided_slice %97 {offsets = [0, 0], sizes = [8, 256], strides = [1, 1]} : vector<8x384xf32> to vector<8x256xf32>
    %99 = vector.extract_strided_slice %94 {offsets = [0, 0], sizes = [8, 256], strides = [1, 1]} : vector<8x384xf32> to vector<8x256xf32>
    %100 = arith.addf %98, %99 : vector<8x256xf32>
    %cst_39 = arith.constant 5.000000e-01 : f32
    %101 = vector.broadcast %cst_39 : f32 to vector<8x256xf32>
    %102 = arith.mulf %101, %100 : vector<8x256xf32>
    %103 = math.tanh %102 : vector<8x256xf32>
    %cst_40 = arith.constant 1.000000e+00 : f32
    %104 = vector.broadcast %cst_40 : f32 to vector<8x256xf32>
    %105 = arith.addf %104, %103 : vector<8x256xf32>
    %cst_41 = arith.constant 5.000000e-01 : f32
    %106 = vector.broadcast %cst_41 : f32 to vector<8x256xf32>
    %107 = arith.mulf %106, %105 : vector<8x256xf32>
    %108 = vector.extract_strided_slice %107 {offsets = [0, 0], sizes = [8, 128], strides = [1, 1]} : vector<8x256xf32> to vector<8x128xf32>
    %109 = vector.extract_strided_slice %107 {offsets = [0, 128], sizes = [8, 128], strides = [1, 1]} : vector<8x256xf32> to vector<8x128xf32>
    %110 = vector.extract_strided_slice %97 {offsets = [0, 256], sizes = [8, 128], strides = [1, 1]} : vector<8x384xf32> to vector<8x128xf32>
    %111 = vector.extract_strided_slice %94 {offsets = [0, 256], sizes = [8, 128], strides = [1, 1]} : vector<8x384xf32> to vector<8x128xf32>
    %112 = arith.mulf %108, %111 : vector<8x128xf32>
    %113 = arith.addf %110, %112 : vector<8x128xf32>
    %114 = math.tanh %113 : vector<8x128xf32>
    %115 = arith.subf %92, %114 : vector<8x128xf32>
    %116 = arith.mulf %109, %115 : vector<8x128xf32>
    %117 = arith.addf %114, %116 : vector<8x128xf32>
    %c4_i32 = arith.constant 4 : i32
    %cst_42 = arith.constant dense<0.000000e+00> : vector<8x384xf32>
    %118 = tpu.matmul %117, %13, %cst_42 {dimension_numbers = #tpu.dot_dimension_numbers<[1], [0], [0], [1], [0, 0, 1, 1], [], []>} : vector<8x128xf32>, vector<128x384xf32>, vector<8x384xf32> -> vector<8x384xf32>
    %119 = arith.addf %118, %16 : vector<8x384xf32>
    %120 = arith.index_cast %c4_i32 : i32 to index
    %c0_43 = arith.constant 0 : index
    %c0_44 = arith.constant 0 : index
    %121 = vector.load %arg8[%120, %c0_43, %c0_44] : memref<5x8x384xf32, #tpu.memory_space<vmem>>, vector<1x8x384xf32>
    %122 = vector.shape_cast %121 : vector<1x8x384xf32> to vector<8x384xf32>
    %123 = vector.extract_strided_slice %122 {offsets = [0, 0], sizes = [8, 256], strides = [1, 1]} : vector<8x384xf32> to vector<8x256xf32>
    %124 = vector.extract_strided_slice %119 {offsets = [0, 0], sizes = [8, 256], strides = [1, 1]} : vector<8x384xf32> to vector<8x256xf32>
    %125 = arith.addf %123, %124 : vector<8x256xf32>
    %cst_45 = arith.constant 5.000000e-01 : f32
    %126 = vector.broadcast %cst_45 : f32 to vector<8x256xf32>
    %127 = arith.mulf %126, %125 : vector<8x256xf32>
    %128 = math.tanh %127 : vector<8x256xf32>
    %cst_46 = arith.constant 1.000000e+00 : f32
    %129 = vector.broadcast %cst_46 : f32 to vector<8x256xf32>
    %130 = arith.addf %129, %128 : vector<8x256xf32>
    %cst_47 = arith.constant 5.000000e-01 : f32
    %131 = vector.broadcast %cst_47 : f32 to vector<8x256xf32>
    %132 = arith.mulf %131, %130 : vector<8x256xf32>
    %133 = vector.extract_strided_slice %132 {offsets = [0, 0], sizes = [8, 128], strides = [1, 1]} : vector<8x256xf32> to vector<8x128xf32>
    %134 = vector.extract_strided_slice %132 {offsets = [0, 128], sizes = [8, 128], strides = [1, 1]} : vector<8x256xf32> to vector<8x128xf32>
    %135 = vector.extract_strided_slice %122 {offsets = [0, 256], sizes = [8, 128], strides = [1, 1]} : vector<8x384xf32> to vector<8x128xf32>
    %136 = vector.extract_strided_slice %119 {offsets = [0, 256], sizes = [8, 128], strides = [1, 1]} : vector<8x384xf32> to vector<8x128xf32>
    %137 = arith.mulf %133, %136 : vector<8x128xf32>
    %138 = arith.addf %135, %137 : vector<8x128xf32>
    %139 = math.tanh %138 : vector<8x128xf32>
    %140 = arith.subf %117, %139 : vector<8x128xf32>
    %141 = arith.mulf %134, %140 : vector<8x128xf32>
    %142 = arith.addf %139, %141 : vector<8x128xf32>
    %c5_i32 = arith.constant 5 : i32
    %c0_48 = arith.constant 0 : index
    %c0_49 = arith.constant 0 : index
    %143 = vector.load %arg7[%c0_48, %c0_49] : memref<8x128xf32, #tpu.memory_space<vmem>>, vector<8x128xf32>
    tpu.vector_store %arg7[%c0_48, %c0_49], %142 {strides = array<i32>} : memref<8x128xf32, #tpu.memory_space<vmem>>, vector<8x128xf32>,
    return
  }
}

</mosaic_0001>

<llo_original>
// kernel: _lambda_.1
$region0: #{_lambda_.1}
  #allocation0 [shape = 'u32[]', space=smem, size = 0x4, offset = 0x4, fixed_abs, tag = 'smem constant byte address 0x4 - core index']
  #allocation1 [shape = 'u32[144,128]{1,0:T(1,128)}', space=vmem, size = 0x12000, scoped, tag = 'internal scratch']
  #allocation2 [shape = 'f32[5,8,384]{2,1,0:T(8,128)}', space=vmem, size = 0xf000, scoped, tag = 'scratch operand']
  %s0 = inlined_call_operand.vmem [shape: f32[40,128], index: 0, kind: input, shape index: {}]
  %s1 = inlined_call_operand.hbm [shape: f32[128,128], index: 1, kind: input, shape index: {}]
  %s2 = inlined_call_operand.vmem [shape: f32[1,128], index: 2, kind: input, shape index: {}]
  %s3 = inlined_call_operand.hbm [shape: f32[128,384], index: 3, kind: input, shape index: {}]
  %s4 = inlined_call_operand.vmem [shape: f32[1,384], index: 4, kind: input, shape index: {}]
  %s5 = inlined_call_operand.hbm [shape: f32[128,384], index: 5, kind: input, shape index: {}]
  %s6 = inlined_call_operand.vmem [shape: f32[1,384], index: 6, kind: input, shape index: {}]
  %s7 = inlined_call_operand.vmem [shape: f32[8,128], index: 7, kind: output, shape index: {}]
  %s8 = sld [smem:[#allocation0]]
  $region50: #{_lambda_.1} parent=0
    _
  %s10 = ssub.s32 1, %s8
  %s11 = scalar_select 0, %s10, %s8
  $region1: #{_lambda_.1} parent=0
    #allocation3 [shape = 'u8[65536]{0}', space=vmem, size = 0x10000, scoped, tag = 'input window, operand 1, single buffered']
    #allocation4 [shape = 's32[1]{0}', space=sflag, size = 0x4, scoped, tag = 'scoped memory for _lambda_.1']
    #allocation5 [shape = 'u8[196608]{0}', space=vmem, size = 0x30000, scoped, tag = 'input window, operand 3, single buffered']
    #allocation6 [shape = 's32[1]{0}', space=sflag, size = 0x4, scoped, tag = 'scoped memory for _lambda_.1']
    #allocation7 [shape = 'u8[196608]{0}', space=vmem, size = 0x30000, scoped, tag = 'input window, operand 5, single buffered']
    %12 = vsyncpa [#allocation4], 0
    %13 = vsyncpa [#allocation6], 0
    // Predicated region
    $region2: #{_lambda_.1} parent=1 // pred_check
      _
    $region3: #{_lambda_.1} parent=1 // pred_check_branch
      %15 = sbr.rel (0) target = $region5
    $region4: #{_lambda_.1} parent=1 // pred_region
      _
    $region5: #{_lambda_.1} parent=1 // pred_fallthru
      _
    // Predicated region
    $region6: #{_lambda_.1} parent=1 // pred_check
      _
    $region7: #{_lambda_.1} parent=1 // pred_check_branch
      %17 = sbr.rel (0) target = $region9
    $region8: #{_lambda_.1} parent=1 // pred_region
      %s19 = ssub.s32 2048, 2048
      %20 = vsyncadd [#allocation4], %s19
      %s21 = sshll.u32 [#allocation3], 4
      %s22 = int_to_ptr.vmem [resolvable:$true] %s21
      %27 = dma.hbm_to_vmem [thread:$0]  %s1, 2048, %s22, [#allocation4], 128, 128, 8
    $region9: #{_lambda_.1} parent=1 // pred_fallthru
      _
    // Predicated region
    $region10: #{_lambda_.1} parent=1 // pred_check
      _
    $region11: #{_lambda_.1} parent=1 // pred_check_branch
      %29 = sbr.rel (0) target = $region13
    $region12: #{_lambda_.1} parent=1 // pred_region
      _
    $region13: #{_lambda_.1} parent=1 // pred_fallthru
      _
    // Predicated region
    $region14: #{_lambda_.1} parent=1 // pred_check
      _
    $region15: #{_lambda_.1} parent=1 // pred_check_branch
      %31 = sbr.rel (0) target = $region17
    $region16: #{_lambda_.1} parent=1 // pred_region
      %s33 = ssub.s32 6144, 6144
      %34 = vsyncadd [#allocation6], %s33
      %s35 = sshll.u32 [#allocation5], 4
      %s36 = int_to_ptr.vmem [resolvable:$true] %s35
      %41 = dma.hbm_to_vmem [thread:$0]  %s3, 6144, %s36, [#allocation6], 384, 384, 24
    $region17: #{_lambda_.1} parent=1 // pred_fallthru
      _
    // Predicated region
    $region18: #{_lambda_.1} parent=1 // pred_check
      _
    $region19: #{_lambda_.1} parent=1 // pred_check_branch
      %43 = sbr.rel (0) target = $region21
    $region20: #{_lambda_.1} parent=1 // pred_region
      _
    $region21: #{_lambda_.1} parent=1 // pred_fallthru
      _
    // Predicated region
    $region22: #{_lambda_.1} parent=1 // pred_check
      _
    $region23: #{_lambda_.1} parent=1 // pred_check_branch
      %45 = sbr.rel (0) target = $region25
    $region24: #{_lambda_.1} parent=1 // pred_region
      %s47 = ssub.s32 6144, 6144
      %48 = vsyncadd [#allocation6], %s47
      %s49 = sshll.u32 [#allocation7], 4
      %s50 = int_to_ptr.vmem [resolvable:$true] %s49
      %55 = dma.hbm_to_vmem [thread:$0]  %s5, 6144, %s50, [#allocation6], 384, 384, 24
    $region25: #{_lambda_.1} parent=1 // pred_fallthru
      _
    // Predicated region
    $region26: #{_lambda_.1} parent=1 // pred_check
      _
    $region27: #{_lambda_.1} parent=1 // pred_check_branch
      %57 = sbr.rel (0) target = $region29
    $region28: #{_lambda_.1} parent=1 // pred_region
      _
    $region29: #{_lambda_.1} parent=1 // pred_fallthru
      _
    // Predicated region
    $region30: #{_lambda_.1} parent=1 // pred_check
      _
    $region31: #{_lambda_.1} parent=1 // pred_check_branch
      %59 = sbr.rel (0) target = $region33
    $region32: #{_lambda_.1} parent=1 // pred_region
      %60 = dma.done [#allocation4], 2048
    $region33: #{_lambda_.1} parent=1 // pred_fallthru
      _
    // Predicated region
    $region34: #{_lambda_.1} parent=1 // pred_check
      _
    $region35: #{_lambda_.1} parent=1 // pred_check_branch
      %62 = sbr.rel (0) target = $region37
    $region36: #{_lambda_.1} parent=1 // pred_region
      %63 = dma.done [#allocation6], 6144
    $region37: #{_lambda_.1} parent=1 // pred_fallthru
      _
    // Predicated region
    $region38: #{_lambda_.1} parent=1 // pred_check
      _
    $region39: #{_lambda_.1} parent=1 // pred_check_branch
      %65 = sbr.rel (0) target = $region41
    $region40: #{_lambda_.1} parent=1 // pred_region
      %66 = dma.done [#allocation6], 6144
    $region41: #{_lambda_.1} parent=1 // pred_fallthru
      _
    %v67 = vld [vmem:[%s0] sm:$0xff]
    %v68 = vld [vmem:[%s0 + $0x8] sm:$0xff]
    %v69 = vld [vmem:[%s0 + $0x10] sm:$0xff]
    %v70 = vld [vmem:[%s0 + $0x18] sm:$0xff]
    %v71 = vld [vmem:[%s0 + $0x20] sm:$0xff]
    %v72 = vld [vmem:[#allocation3] sm:$0xff]
    %v73 = vld [vmem:[#allocation3 + $0x8] sm:$0xff]
    %v74 = vld [vmem:[#allocation3 + $0x10] sm:$0xff]
    %v75 = vld [vmem:[#allocation3 + $0x18] sm:$0xff]
    %v76 = vld [vmem:[#allocation3 + $0x20] sm:$0xff]
    %v77 = vld [vmem:[#allocation3 + $0x28] sm:$0xff]
    %v78 = vld [vmem:[#allocation3 + $0x30] sm:$0xff]
    %v79 = vld [vmem:[#allocation3 + $0x38] sm:$0xff]
    %v80 = vld [vmem:[#allocation3 + $0x40] sm:$0xff]
    %v81 = vld [vmem:[#allocation3 + $0x48] sm:$0xff]
    %v82 = vld [vmem:[#allocation3 + $0x50] sm:$0xff]
    %v83 = vld [vmem:[#allocation3 + $0x58] sm:$0xff]
    %v84 = vld [vmem:[#allocation3 + $0x60] sm:$0xff]
    %v85 = vld [vmem:[#allocation3 + $0x68] sm:$0xff]
    %v86 = vld [vmem:[#allocation3 + $0x70] sm:$0xff]
    %v87 = vld [vmem:[#allocation3 + $0x78] sm:$0xff]
    %v88 = vld [vmem:[%s2] sm:$0x1]
    %v90 = vlaneseq
    %v91 = vshrl.u32 %v90, 7
    %v92 = vsub.s32 0, %v91
    %v93 = vrot.slane %v88, %v92
    %95 = vmatprep.subr.mxu0 0.0
    %96 = vmatpush1.msra.mxu0 %v72
    %97 = vmatprep.subr.mxu0 0.0
    %98 = vmatpush1.msra.mxu0 %v73
    %99 = vmatprep.subr.mxu0 0.0
    %100 = vmatpush1.msra.mxu0 %v74
    %101 = vmatprep.subr.mxu0 0.0
    %102 = vmatpush1.msra.mxu0 %v75
    %103 = vmatprep.subr.mxu0 0.0
    %104 = vmatpush1.msra.mxu0 %v76
    %105 = vmatprep.subr.mxu0 0.0
    %106 = vmatpush1.msra.mxu0 %v77
    %107 = vmatprep.subr.mxu0 0.0
    %108 = vmatpush1.msra.mxu0 %v78
    %109 = vmatprep.subr.mxu0 0.0
    %110 = vmatpush1.msra.mxu0 %v79
    %111 = vmatprep.subr.mxu0 0.0
    %112 = vmatpush1.msra.mxu0 %v80
    %113 = vmatprep.subr.mxu0 0.0
    %114 = vmatpush1.msra.mxu0 %v81
    %115 = vmatprep.subr.mxu0 0.0
    %116 = vmatpush1.msra.mxu0 %v82
    %117 = vmatprep.subr.mxu0 0.0
    %118 = vmatpush1.msra.mxu0 %v83
    %119 = vmatprep.subr.mxu0 0.0
    %120 = vmatpush1.msra.mxu0 %v84
    %121 = vmatprep.subr.mxu0 0.0
    %122 = vmatpush1.msra.mxu0 %v85
    %123 = vmatprep.subr.mxu0 0.0
    %124 = vmatpush1.msra.mxu0 %v86
    %125 = vmatprep.subr.mxu0 0.0
    %126 = vmatpush1.msra.mxu0 %v87
    %127 = vmatprep.subr.mxu0 0.0
    %128 = vmatpush1.msra.mxu0 0.0
    %129 = vmatprep.subr.mxu0 0.0
    %130 = vmatpush1.msra.mxu0 0.0
    %131 = vmatprep.subr.mxu0 0.0
    %132 = vmatpush1.msra.mxu0 0.0
    %133 = vmatprep.subr.mxu0 0.0
    %134 = vmatpush1.msra.mxu0 0.0
    %135 = vmatprep.subr.mxu0 0.0
    %136 = vmatpush1.msra.mxu0 0.0
    %137 = vmatprep.subr.mxu0 0.0
    %138 = vmatpush1.msra.mxu0 0.0
    %139 = vmatprep.subr.mxu0 0.0
    %140 = vmatpush1.msra.mxu0 0.0
    %141 = vmatprep.subr.mxu0 0.0
    %142 = vmatpush1.msra.mxu0 0.0
    %143 = vmatprep.subr.mxu0 0.0
    %144 = vmatpush1.msra.mxu0 0.0
    %145 = vmatprep.subr.mxu0 0.0
    %146 = vmatpush1.msra.mxu0 0.0
    %147 = vmatprep.subr.mxu0 0.0
    %148 = vmatpush1.msra.mxu0 0.0
    %149 = vmatprep.subr.mxu0 0.0
    %150 = vmatpush1.msra.mxu0 0.0
    %151 = vmatprep.subr.mxu0 0.0
    %152 = vmatpush1.msra.mxu0 0.0
    %153 = vmatprep.subr.mxu0 0.0
    %154 = vmatpush1.msra.mxu0 0.0
    %155 = vmatprep.subr.mxu0 0.0
    %156 = vmatpush1.msra.mxu0 0.0
    %157 = vmatprep.subr.mxu0 0.0
    %158 = vmatpush1.msra.mxu0 0.0
    %159 = vmatprep.mubr.f32.mxu0 0.0
    %160 = vmatmul.mubr.f32.gmra.mrb[0].mxu0 %v67
    %v161 = vpop.f32.mrb[0].mxu0
    %v162 = vadd.f32 %v93, %v161
    %v163 = vpop.f32.mrb[0].mxu0
    %164 = vmatprep.mubr.f32.mxu0 0.0
    %165 = vmatmul.mubr.f32.gmra.mrb[0].mxu0 %v68
    %v166 = vpop.f32.mrb[0].mxu0
    %v167 = vadd.f32 %v93, %v166
    %v168 = vpop.f32.mrb[0].mxu0
    %169 = vmatprep.mubr.f32.mxu0 0.0
    %170 = vmatmul.mubr.f32.gmra.mrb[0].mxu0 %v69
    %v171 = vpop.f32.mrb[0].mxu0
    %v172 = vadd.f32 %v93, %v171
    %v173 = vpop.f32.mrb[0].mxu0
    %174 = vmatprep.mubr.f32.mxu0 0.0
    %175 = vmatmul.mubr.f32.gmra.mrb[0].mxu0 %v70
    %v176 = vpop.f32.mrb[0].mxu0
    %v177 = vadd.f32 %v93, %v176
    %v178 = vpop.f32.mrb[0].mxu0
    %179 = vmatprep.mubr.f32.mxu0 0.0
    %180 = vmatmul.mubr.f32.gmra.mrb[0].mxu0 %v71
    %v181 = vpop.f32.mrb[0].mxu0
    %v182 = vadd.f32 %v93, %v181
    %v183 = vpop.f32.mrb[0].mxu0
    %184 = vdwg.mxu0
    %v185 = vld [vmem:[#allocation5] sm:$0xff]
    %v186 = vld [vmem:[#allocation5 + $0x8] sm:$0xff]
    %v187 = vld [vmem:[#allocation5 + $0x10] sm:$0xff]
    %v188 = vld [vmem:[#allocation5 + $0x18] sm:$0xff]
    %v189 = vld [vmem:[#allocation5 + $0x20] sm:$0xff]
    %v190 = vld [vmem:[#allocation5 + $0x28] sm:$0xff]
    %v191 = vld [vmem:[#allocation5 + $0x30] sm:$0xff]
    %v192 = vld [vmem:[#allocation5 + $0x38] sm:$0xff]
    %v193 = vld [vmem:[#allocation5 + $0x40] sm:$0xff]
    %v194 = vld [vmem:[#allocation5 + $0x48] sm:$0xff]
    %v195 = vld [vmem:[#allocation5 + $0x50] sm:$0xff]
    %v196 = vld [vmem:[#allocation5 + $0x58] sm:$0xff]
    %v197 = vld [vmem:[#allocation5 + $0x60] sm:$0xff]
    %v198 = vld [vmem:[#allocation5 + $0x68] sm:$0xff]
    %v199 = vld [vmem:[#allocation5 + $0x70] sm:$0xff]
    %v200 = vld [vmem:[#allocation5 + $0x78] sm:$0xff]
    %v201 = vld [vmem:[#allocation5 + $0x80] sm:$0xff]
    %v202 = vld [vmem:[#allocation5 + $0x88] sm:$0xff]
    %v203 = vld [vmem:[#allocation5 + $0x90] sm:$0xff]
    %v204 = vld [vmem:[#allocation5 + $0x98] sm:$0xff]
    %v205 = vld [vmem:[#allocation5 + $0xa0] sm:$0xff]
    %v206 = vld [vmem:[#allocation5 + $0xa8] sm:$0xff]
    %v207 = vld [vmem:[#allocation5 + $0xb0] sm:$0xff]
    %v208 = vld [vmem:[#allocation5 + $0xb8] sm:$0xff]
    %v209 = vld [vmem:[#allocation5 + $0xc0] sm:$0xff]
    %v210 = vld [vmem:[#allocation5 + $0xc8] sm:$0xff]
    %v211 = vld [vmem:[#allocation5 + $0xd0] sm:$0xff]
    %v212 = vld [vmem:[#allocation5 + $0xd8] sm:$0xff]
    %v213 = vld [vmem:[#allocation5 + $0xe0] sm:$0xff]
    %v214 = vld [vmem:[#allocation5 + $0xe8] sm:$0xff]
    %v215 = vld [vmem:[#allocation5 + $0xf0] sm:$0xff]
    %v216 = vld [vmem:[#allocation5 + $0xf8] sm:$0xff]
    %v217 = vld [vmem:[#allocation5 + $0x100] sm:$0xff]
    %v218 = vld [vmem:[#allocation5 + $0x108] sm:$0xff]
    %v219 = vld [vmem:[#allocation5 + $0x110] sm:$0xff]
    %v220 = vld [vmem:[#allocation5 + $0x118] sm:$0xff]
    %v221 = vld [vmem:[#allocation5 + $0x120] sm:$0xff]
    %v222 = vld [vmem:[#allocation5 + $0x128] sm:$0xff]
    %v223 = vld [vmem:[#allocation5 + $0x130] sm:$0xff]
    %v224 = vld [vmem:[#allocation5 + $0x138] sm:$0xff]
    %v225 = vld [vmem:[#allocation5 + $0x140] sm:$0xff]
    %v226 = vld [vmem:[#allocation5 + $0x148] sm:$0xff]
    %v227 = vld [vmem:[#allocation5 + $0x150] sm:$0xff]
    %v228 = vld [vmem:[#allocation5 + $0x158] sm:$0xff]
    %v229 = vld [vmem:[#allocation5 + $0x160] sm:$0xff]
    %v230 = vld [vmem:[#allocation5 + $0x168] sm:$0xff]
    %v231 = vld [vmem:[#allocation5 + $0x170] sm:$0xff]
    %v232 = vld [vmem:[#allocation5 + $0x178] sm:$0xff]
    %v233 = vld [vmem:[%s4] sm:$0x7]
    %v235 = vlaneseq
    %v236 = vshrl.u32 %v235, 7
    %v237 = vsub.s32 0, %v236
    %v238 = vrot.slane %v233, %v237
    %v239 = vlaneseq
    %v240 = vshrl.u32 %v239, 7
    %v241 = vsub.s32 1, %v240
    %v242 = vrot.slane %v233, %v241
    %v243 = vlaneseq
    %v244 = vshrl.u32 %v243, 7
    %v245 = vsub.s32 2, %v244
    %v246 = vrot.slane %v233, %v245
    %250 = vmatprep.subr.mxu0 %v186
    %251 = vmatpush1.msra.mxu0 %v185
    %252 = vmatprep.subr.mxu0 %v189
    %253 = vmatpush1.msra.mxu0 %v188
    %254 = vmatprep.subr.mxu0 %v192
    %255 = vmatpush1.msra.mxu0 %v191
    %256 = vmatprep.subr.mxu0 %v195
    %257 = vmatpush1.msra.mxu0 %v194
    %258 = vmatprep.subr.mxu0 %v198
    %259 = vmatpush1.msra.mxu0 %v197
    %260 = vmatprep.subr.mxu0 %v201
    %261 = vmatpush1.msra.mxu0 %v200
    %262 = vmatprep.subr.mxu0 %v204
    %263 = vmatpush1.msra.mxu0 %v203
    %264 = vmatprep.subr.mxu0 %v207
    %265 = vmatpush1.msra.mxu0 %v206
    %266 = vmatprep.subr.mxu0 %v210
    %267 = vmatpush1.msra.mxu0 %v209
    %268 = vmatprep.subr.mxu0 %v213
    %269 = vmatpush1.msra.mxu0 %v212
    %270 = vmatprep.subr.mxu0 %v216
    %271 = vmatpush1.msra.mxu0 %v215
    %272 = vmatprep.subr.mxu0 %v219
    %273 = vmatpush1.msra.mxu0 %v218
    %274 = vmatprep.subr.mxu0 %v222
    %275 = vmatpush1.msra.mxu0 %v221
    %276 = vmatprep.subr.mxu0 %v225
    %277 = vmatpush1.msra.mxu0 %v224
    %278 = vmatprep.subr.mxu0 %v228
    %279 = vmatpush1.msra.mxu0 %v227
    %280 = vmatprep.subr.mxu0 %v231
    %281 = vmatpush1.msra.mxu0 %v230
    %282 = vmatprep.subr.mxu0 0.0
    %283 = vmatpush1.msra.mxu0 0.0
    %284 = vmatprep.subr.mxu0 0.0
    %285 = vmatpush1.msra.mxu0 0.0
    %286 = vmatprep.subr.mxu0 0.0
    %287 = vmatpush1.msra.mxu0 0.0
    %288 = vmatprep.subr.mxu0 0.0
    %289 = vmatpush1.msra.mxu0 0.0
    %290 = vmatprep.subr.mxu0 0.0
    %291 = vmatpush1.msra.mxu0 0.0
    %292 = vmatprep.subr.mxu0 0.0
    %293 = vmatpush1.msra.mxu0 0.0
    %294 = vmatprep.subr.mxu0 0.0
    %295 = vmatpush1.msra.mxu0 0.0
    %296 = vmatprep.subr.mxu0 0.0
    %297 = vmatpush1.msra.mxu0 0.0
    %298 = vmatprep.subr.mxu0 0.0
    %299 = vmatpush1.msra.mxu0 0.0
    %300 = vmatprep.subr.mxu0 0.0
    %301 = vmatpush1.msra.mxu0 0.0
    %302 = vmatprep.subr.mxu0 0.0
    %303 = vmatpush1.msra.mxu0 0.0
    %304 = vmatprep.subr.mxu0 0.0
    %305 = vmatpush1.msra.mxu0 0.0
    %306 = vmatprep.subr.mxu0 0.0
    %307 = vmatpush1.msra.mxu0 0.0
    %308 = vmatprep.subr.mxu0 0.0
    %309 = vmatpush1.msra.mxu0 0.0
    %310 = vmatprep.subr.mxu0 0.0
    %311 = vmatpush1.msra.mxu0 0.0
    %312 = vmatprep.subr.mxu0 0.0
    %313 = vmatpush1.msra.mxu0 0.0
    %314 = vmatprep.mubr.f32.mxu0 0.0
    %315 = vmatmul.mubr.f32.gmra.mrb[0].mxu0 %v162
    %v316 = vpop.f32.mrb[0].mxu0
    %v317 = vadd.f32 %v238, %v316
    %v318 = vpop.f32.mrb[0].mxu0
    %v319 = vadd.f32 %v242, %v318
    %320 = vmatprep.mubr.f32.mxu0 0.0
    %321 = vmatmul.mubr.f32.gmra.mrb[0].mxu0 %v167
    %v322 = vpop.f32.mrb[0].mxu0
    %v323 = vadd.f32 %v238, %v322
    %v324 = vpop.f32.mrb[0].mxu0
    %v325 = vadd.f32 %v242, %v324
    %326 = vmatprep.mubr.f32.mxu0 0.0
    %327 = vmatmul.mubr.f32.gmra.mrb[0].mxu0 %v172
    %v328 = vpop.f32.mrb[0].mxu0
    %v329 = vadd.f32 %v238, %v328
    %v330 = vpop.f32.mrb[0].mxu0
    %v331 = vadd.f32 %v242, %v330
    %332 = vmatprep.mubr.f32.mxu0 0.0
    %333 = vmatmul.mubr.f32.gmra.mrb[0].mxu0 %v177
    %v334 = vpop.f32.mrb[0].mxu0
    %v335 = vadd.f32 %v238, %v334
    %v336 = vpop.f32.mrb[0].mxu0
    %v337 = vadd.f32 %v242, %v336
    %338 = vmatprep.mubr.f32.mxu0 0.0
    %339 = vmatmul.mubr.f32.gmra.mrb[0].mxu0 %v182
    %v340 = vpop.f32.mrb[0].mxu0
    %v341 = vadd.f32 %v238, %v340
    %v342 = vpop.f32.mrb[0].mxu0
    %v343 = vadd.f32 %v242, %v342
    %344 = vdwg.mxu0
    %345 = vmatprep.subr.mxu0 0.0
    %346 = vmatpush1.msra.mxu0 %v187
    %347 = vmatprep.subr.mxu0 0.0
    %348 = vmatpush1.msra.mxu0 %v190
    %349 = vmatprep.subr.mxu0 0.0
    %350 = vmatpush1.msra.mxu0 %v193
    %351 = vmatprep.subr.mxu0 0.0
    %352 = vmatpush1.msra.mxu0 %v196
    %353 = vmatprep.subr.mxu0 0.0
    %354 = vmatpush1.msra.mxu0 %v199
    %355 = vmatprep.subr.mxu0 0.0
    %356 = vmatpush1.msra.mxu0 %v202
    %357 = vmatprep.subr.mxu0 0.0
    %358 = vmatpush1.msra.mxu0 %v205
    %359 = vmatprep.subr.mxu0 0.0
    %360 = vmatpush1.msra.mxu0 %v208
    %361 = vmatprep.subr.mxu0 0.0
    %362 = vmatpush1.msra.mxu0 %v211
    %363 = vmatprep.subr.mxu0 0.0
    %364 = vmatpush1.msra.mxu0 %v214
    %365 = vmatprep.subr.mxu0 0.0
    %366 = vmatpush1.msra.mxu0 %v217
    %367 = vmatprep.subr.mxu0 0.0
    %368 = vmatpush1.msra.mxu0 %v220
    %369 = vmatprep.subr.mxu0 0.0
    %370 = vmatpush1.msra.mxu0 %v223
    %371 = vmatprep.subr.mxu0 0.0
    %372 = vmatpush1.msra.mxu0 %v226
    %373 = vmatprep.subr.mxu0 0.0
    %374 = vmatpush1.msra.mxu0 %v229
    %375 = vmatprep.subr.mxu0 0.0
    %376 = vmatpush1.msra.mxu0 %v232
    %377 = vmatprep.subr.mxu0 0.0
    %378 = vmatpush1.msra.mxu0 0.0
    %379 = vmatprep.subr.mxu0 0.0
    %380 = vmatpush1.msra.mxu0 0.0
    %381 = vmatprep.subr.mxu0 0.0
    %382 = vmatpush1.msra.mxu0 0.0
    %383 = vmatprep.subr.mxu0 0.0
    %384 = vmatpush1.msra.mxu0 0.0
    %385 = vmatprep.subr.mxu0 0.0
    %386 = vmatpush1.msra.mxu0 0.0
    %387 = vmatprep.subr.mxu0 0.0
    %388 = vmatpush1.msra.mxu0 0.0
    %389 = vmatprep.subr.mxu0 0.0
    %390 = vmatpush1.msra.mxu0 0.0
    %391 = vmatprep.subr.mxu0 0.0
    %392 = vmatpush1.msra.mxu0 0.0
    %393 = vmatprep.subr.mxu0 0.0
    %394 = vmatpush1.msra.mxu0 0.0
    %395 = vmatprep.subr.mxu0 0.0
    %396 = vmatpush1.msra.mxu0 0.0
    %397 = vmatprep.subr.mxu0 0.0
    %398 = vmatpush1.msra.mxu0 0.0
    %399 = vmatprep.subr.mxu0 0.0
    %400 = vmatpush1.msra.mxu0 0.0
    %401 = vmatprep.subr.mxu0 0.0
    %402 = vmatpush1.msra.mxu0 0.0
    %403 = vmatprep.subr.mxu0 0.0
    %404 = vmatpush1.msra.mxu0 0.0
    %405 = vmatprep.subr.mxu0 0.0
    %406 = vmatpush1.msra.mxu0 0.0
    %407 = vmatprep.subr.mxu0 0.0
    %408 = vmatpush1.msra.mxu0 0.0
    %409 = vmatprep.mubr.f32.mxu0 0.0
    %410 = vmatmul.mubr.f32.gmra.mrb[0].mxu0 %v162
    %v411 = vpop.f32.mrb[0].mxu0
    %v412 = vadd.f32 %v246, %v411
    %v413 = vpop.f32.mrb[0].mxu0
    %414 = vmatprep.mubr.f32.mxu0 0.0
    %415 = vmatmul.mubr.f32.gmra.mrb[0].mxu0 %v167
    %v416 = vpop.f32.mrb[0].mxu0
    %v417 = vadd.f32 %v246, %v416
    %v418 = vpop.f32.mrb[0].mxu0
    %419 = vmatprep.mubr.f32.mxu0 0.0
    %420 = vmatmul.mubr.f32.gmra.mrb[0].mxu0 %v172
    %v421 = vpop.f32.mrb[0].mxu0
    %v422 = vadd.f32 %v246, %v421
    %v423 = vpop.f32.mrb[0].mxu0
    %424 = vmatprep.mubr.f32.mxu0 0.0
    %425 = vmatmul.mubr.f32.gmra.mrb[0].mxu0 %v177
    %v426 = vpop.f32.mrb[0].mxu0
    %v427 = vadd.f32 %v246, %v426
    %v428 = vpop.f32.mrb[0].mxu0
    %429 = vmatprep.mubr.f32.mxu0 0.0
    %430 = vmatmul.mubr.f32.gmra.mrb[0].mxu0 %v182
    %v431 = vpop.f32.mrb[0].mxu0
    %v432 = vadd.f32 %v246, %v431
    %v433 = vpop.f32.mrb[0].mxu0
    %434 = vdwg.mxu0
    %435 = vst [vmem:[#allocation2] sm:$0xff] %v317
    %436 = vst [vmem:[#allocation2 + $0x8] sm:$0xff] %v319
    %437 = vst [vmem:[#allocation2 + $0x10] sm:$0xff] %v412
    %438 = vst [vmem:[#allocation2 + $0x18] sm:$0xff] %v323
    %439 = vst [vmem:[#allocation2 + $0x20] sm:$0xff] %v325
    %440 = vst [vmem:[#allocation2 + $0x28] sm:$0xff] %v417
    %441 = vst [vmem:[#allocation2 + $0x30] sm:$0xff] %v329
    %442 = vst [vmem:[#allocation2 + $0x38] sm:$0xff] %v331
    %443 = vst [vmem:[#allocation2 + $0x40] sm:$0xff] %v422
    %444 = vst [vmem:[#allocation2 + $0x48] sm:$0xff] %v335
    %445 = vst [vmem:[#allocation2 + $0x50] sm:$0xff] %v337
    %446 = vst [vmem:[#allocation2 + $0x58] sm:$0xff] %v427
    %447 = vst [vmem:[#allocation2 + $0x60] sm:$0xff] %v341
    %448 = vst [vmem:[#allocation2 + $0x68] sm:$0xff] %v343
    %449 = vst [vmem:[#allocation2 + $0x70] sm:$0xff] %v432
    %v450 = vld [vmem:[#allocation7] sm:$0xff]
    %v451 = vld [vmem:[#allocation7 + $0x8] sm:$0xff]
    %v452 = vld [vmem:[#allocation7 + $0x10] sm:$0xff]
    %v453 = vld [vmem:[#allocation7 + $0x18] sm:$0xff]
    %v454 = vld [vmem:[#allocation7 + $0x20] sm:$0xff]
    %v455 = vld [vmem:[#allocation7 + $0x28] sm:$0xff]
    %v456 = vld [vmem:[#allocation7 + $0x30] sm:$0xff]
    %v457 = vld [vmem:[#allocation7 + $0x38] sm:$0xff]
    %v458 = vld [vmem:[#allocation7 + $0x40] sm:$0xff]
    %v459 = vld [vmem:[#allocation7 + $0x48] sm:$0xff]
    %v460 = vld [vmem:[#allocation7 + $0x50] sm:$0xff]
    %v461 = vld [vmem:[#allocation7 + $0x58] sm:$0xff]
    %v462 = vld [vmem:[#allocation7 + $0x60] sm:$0xff]
    %v463 = vld [vmem:[#allocation7 + $0x68] sm:$0xff]
    %v464 = vld [vmem:[#allocation7 + $0x70] sm:$0xff]
    %v465 = vld [vmem:[#allocation7 + $0x78] sm:$0xff]
    %v466 = vld [vmem:[#allocation7 + $0x80] sm:$0xff]
    %v467 = vld [vmem:[#allocation7 + $0x88] sm:$0xff]
    %v468 = vld [vmem:[#allocation7 + $0x90] sm:$0xff]
    %v469 = vld [vmem:[#allocation7 + $0x98] sm:$0xff]
    %v470 = vld [vmem:[#allocation7 + $0xa0] sm:$0xff]
    %v471 = vld [vmem:[#allocation7 + $0xa8] sm:$0xff]
    %v472 = vld [vmem:[#allocation7 + $0xb0] sm:$0xff]
    %v473 = vld [vmem:[#allocation7 + $0xb8] sm:$0xff]
    %v474 = vld [vmem:[#allocation7 + $0xc0] sm:$0xff]
    %v475 = vld [vmem:[#allocation7 + $0xc8] sm:$0xff]
    %v476 = vld [vmem:[#allocation7 + $0xd0] sm:$0xff]
    %v477 = vld [vmem:[#allocation7 + $0xd8] sm:$0xff]
    %v478 = vld [vmem:[#allocation7 + $0xe0] sm:$0xff]
    %v479 = vld [vmem:[#allocation7 + $0xe8] sm:$0xff]
    %v480 = vld [vmem:[#allocation7 + $0xf0] sm:$0xff]
    %v481 = vld [vmem:[#allocation7 + $0xf8] sm:$0xff]
    %v482 = vld [vmem:[#allocation7 + $0x100] sm:$0xff]
    %v483 = vld [vmem:[#allocation7 + $0x108] sm:$0xff]
    %v484 = vld [vmem:[#allocation7 + $0x110] sm:$0xff]
    %v485 = vld [vmem:[#allocation7 + $0x118] sm:$0xff]
    %v486 = vld [vmem:[#allocation7 + $0x120] sm:$0xff]
    %v487 = vld [vmem:[#allocation7 + $0x128] sm:$0xff]
    %v488 = vld [vmem:[#allocation7 + $0x130] sm:$0xff]
    %v489 = vld [vmem:[#allocation7 + $0x138] sm:$0xff]
    %v490 = vld [vmem:[#allocation7 + $0x140] sm:$0xff]
    %v491 = vld [vmem:[#allocation7 + $0x148] sm:$0xff]
    %v492 = vld [vmem:[#allocation7 + $0x150] sm:$0xff]
    %v493 = vld [vmem:[#allocation7 + $0x158] sm:$0xff]
    %v494 = vld [vmem:[#allocation7 + $0x160] sm:$0xff]
    %v495 = vld [vmem:[#allocation7 + $0x168] sm:$0xff]
    %v496 = vld [vmem:[#allocation7 + $0x170] sm:$0xff]
    %v497 = vld [vmem:[#allocation7 + $0x178] sm:$0xff]
    %v498 = vld [vmem:[%s6] sm:$0x7]
    %v500 = vlaneseq
    %v501 = vshrl.u32 %v500, 7
    %v502 = vsub.s32 0, %v501
    %v503 = vrot.slane %v498, %v502
    %v504 = vlaneseq
    %v505 = vshrl.u32 %v504, 7
    %v506 = vsub.s32 1, %v505
    %v507 = vrot.slane %v498, %v506
    %v508 = vlaneseq
    %v509 = vshrl.u32 %v508, 7
    %v510 = vsub.s32 2, %v509
    %v511 = vrot.slane %v498, %v510
    %515 = vmatprep.subr.mxu0 %v451
    %516 = vmatpush1.msra.mxu0 %v450
    %517 = vmatprep.subr.mxu0 %v454
    %518 = vmatpush1.msra.mxu0 %v453
    %519 = vmatprep.subr.mxu0 %v457
    %520 = vmatpush1.msra.mxu0 %v456
    %521 = vmatprep.subr.mxu0 %v460
    %522 = vmatpush1.msra.mxu0 %v459
    %523 = vmatprep.subr.mxu0 %v463
    %524 = vmatpush1.msra.mxu0 %v462
    %525 = vmatprep.subr.mxu0 %v466
    %526 = vmatpush1.msra.mxu0 %v465
    %527 = vmatprep.subr.mxu0 %v469
    %528 = vmatpush1.msra.mxu0 %v468
    %529 = vmatprep.subr.mxu0 %v472
    %530 = vmatpush1.msra.mxu0 %v471
    %531 = vmatprep.subr.mxu0 %v475
    %532 = vmatpush1.msra.mxu0 %v474
    %533 = vmatprep.subr.mxu0 %v478
    %534 = vmatpush1.msra.mxu0 %v477
    %535 = vmatprep.subr.mxu0 %v481
    %536 = vmatpush1.msra.mxu0 %v480
    %537 = vmatprep.subr.mxu0 %v484
    %538 = vmatpush1.msra.mxu0 %v483
    %539 = vmatprep.subr.mxu0 %v487
    %540 = vmatpush1.msra.mxu0 %v486
    %541 = vmatprep.subr.mxu0 %v490
    %542 = vmatpush1.msra.mxu0 %v489
    %543 = vmatprep.subr.mxu0 %v493
    %544 = vmatpush1.msra.mxu0 %v492
    %545 = vmatprep.subr.mxu0 %v496
    %546 = vmatpush1.msra.mxu0 %v495
    %547 = vmatprep.subr.mxu0 0.0
    %548 = vmatpush1.msra.mxu0 0.0
    %549 = vmatprep.subr.mxu0 0.0
    %550 = vmatpush1.msra.mxu0 0.0
    %551 = vmatprep.subr.mxu0 0.0
    %552 = vmatpush1.msra.mxu0 0.0
    %553 = vmatprep.subr.mxu0 0.0
    %554 = vmatpush1.msra.mxu0 0.0
    %555 = vmatprep.subr.mxu0 0.0
    %556 = vmatpush1.msra.mxu0 0.0
    %557 = vmatprep.subr.mxu0 0.0
    %558 = vmatpush1.msra.mxu0 0.0
    %559 = vmatprep.subr.mxu0 0.0
    %560 = vmatpush1.msra.mxu0 0.0
    %561 = vmatprep.subr.mxu0 0.0
    %562 = vmatpush1.msra.mxu0 0.0
    %563 = vmatprep.subr.mxu0 0.0
    %564 = vmatpush1.msra.mxu0 0.0
    %565 = vmatprep.subr.mxu0 0.0
    %566 = vmatpush1.msra.mxu0 0.0
    %567 = vmatprep.subr.mxu0 0.0
    %568 = vmatpush1.msra.mxu0 0.0
    %569 = vmatprep.subr.mxu0 0.0
    %570 = vmatpush1.msra.mxu0 0.0
    %571 = vmatprep.subr.mxu0 0.0
    %572 = vmatpush1.msra.mxu0 0.0
    %573 = vmatprep.subr.mxu0 0.0
    %574 = vmatpush1.msra.mxu0 0.0
    %575 = vmatprep.subr.mxu0 0.0
    %576 = vmatpush1.msra.mxu0 0.0
    %577 = vmatprep.subr.mxu0 0.0
    %578 = vmatpush1.msra.mxu0 0.0
    %579 = vmatprep.mubr.f32.mxu0 0.0
    %580 = vmatmul.mubr.f32.gmra.mrb[0].mxu0 0.0
    %v581 = vpop.f32.mrb[0].mxu0
    %v582 = vadd.f32 %v503, %v581
    %v583 = vpop.f32.mrb[0].mxu0
    %v584 = vadd.f32 %v507, %v583
    %585 = vdwg.mxu0
    %586 = vmatprep.subr.mxu0 0.0
    %587 = vmatpush1.msra.mxu0 %v452
    %588 = vmatprep.subr.mxu0 0.0
    %589 = vmatpush1.msra.mxu0 %v455
    %590 = vmatprep.subr.mxu0 0.0
    %591 = vmatpush1.msra.mxu0 %v458
    %592 = vmatprep.subr.mxu0 0.0
    %593 = vmatpush1.msra.mxu0 %v461
    %594 = vmatprep.subr.mxu0 0.0
    %595 = vmatpush1.msra.mxu0 %v464
    %596 = vmatprep.subr.mxu0 0.0
    %597 = vmatpush1.msra.mxu0 %v467
    %598 = vmatprep.subr.mxu0 0.0
    %599 = vmatpush1.msra.mxu0 %v470
    %600 = vmatprep.subr.mxu0 0.0
    %601 = vmatpush1.msra.mxu0 %v473
    %602 = vmatprep.subr.mxu0 0.0
    %603 = vmatpush1.msra.mxu0 %v476
    %604 = vmatprep.subr.mxu0 0.0
    %605 = vmatpush1.msra.mxu0 %v479
    %606 = vmatprep.subr.mxu0 0.0
    %607 = vmatpush1.msra.mxu0 %v482
    %608 = vmatprep.subr.mxu0 0.0
    %609 = vmatpush1.msra.mxu0 %v485
    %610 = vmatprep.subr.mxu0 0.0
    %611 = vmatpush1.msra.mxu0 %v488
    %612 = vmatprep.subr.mxu0 0.0
    %613 = vmatpush1.msra.mxu0 %v491
    %614 = vmatprep.subr.mxu0 0.0
    %615 = vmatpush1.msra.mxu0 %v494
    %616 = vmatprep.subr.mxu0 0.0
    %617 = vmatpush1.msra.mxu0 %v497
    %618 = vmatprep.subr.mxu0 0.0
    %619 = vmatpush1.msra.mxu0 0.0
    %620 = vmatprep.subr.mxu0 0.0
    %621 = vmatpush1.msra.mxu0 0.0
    %622 = vmatprep.subr.mxu0 0.0
    %623 = vmatpush1.msra.mxu0 0.0
    %624 = vmatprep.subr.mxu0 0.0
    %625 = vmatpush1.msra.mxu0 0.0
    %626 = vmatprep.subr.mxu0 0.0
    %627 = vmatpush1.msra.mxu0 0.0
    %628 = vmatprep.subr.mxu0 0.0
    %629 = vmatpush1.msra.mxu0 0.0
    %630 = vmatprep.subr.mxu0 0.0
    %631 = vmatpush1.msra.mxu0 0.0
    %632 = vmatprep.subr.mxu0 0.0
    %633 = vmatpush1.msra.mxu0 0.0
    %634 = vmatprep.subr.mxu0 0.0
    %635 = vmatpush1.msra.mxu0 0.0
    %636 = vmatprep.subr.mxu0 0.0
    %637 = vmatpush1.msra.mxu0 0.0
    %638 = vmatprep.subr.mxu0 0.0
    %639 = vmatpush1.msra.mxu0 0.0
    %640 = vmatprep.subr.mxu0 0.0
    %641 = vmatpush1.msra.mxu0 0.0
    %642 = vmatprep.subr.mxu0 0.0
    %643 = vmatpush1.msra.mxu0 0.0
    %644 = vmatprep.subr.mxu0 0.0
    %645 = vmatpush1.msra.mxu0 0.0
    %646 = vmatprep.subr.mxu0 0.0
    %647 = vmatpush1.msra.mxu0 0.0
    %648 = vmatprep.subr.mxu0 0.0
    %649 = vmatpush1.msra.mxu0 0.0
    %650 = vmatprep.mubr.f32.mxu0 0.0
    %651 = vmatmul.mubr.f32.gmra.mrb[0].mxu0 0.0
    %v652 = vpop.f32.mrb[0].mxu0
    %v653 = vadd.f32 %v511, %v652
    %v654 = vpop.f32.mrb[0].mxu0
    %655 = vdwg.mxu0
    %v656 = vld [vmem:[#allocation2] sm:$0xff]
    %v657 = vld [vmem:[#allocation2 + $0x8] sm:$0xff]
    %v658 = vld [vmem:[#allocation2 + $0x10] sm:$0xff]
    %v659 = vadd.f32 %v656, %v582
    %v660 = vadd.f32 %v657, %v584
    %v661 = vmul.f32 %v659, 0.5
    %v662 = vmul.f32 %v660, 0.5
    %v663 = vtanh.pop %v661
    %v664 = vtanh.pop %v662
    %v665 = vadd.f32 %v663, 1.0
    %v666 = vadd.f32 %v664, 1.0
    %v667 = vmul.f32 %v665, 0.5
    %v668 = vmul.f32 %v666, 0.5
    %v669 = vmul.f32 %v667, %v653
    %v670 = vadd.f32 %v658, %v669
    %v671 = vtanh.pop %v670
    %v672 = vsub.f32 0.0, %v671
    %v673 = vmul.f32 %v668, %v672
    %v674 = vadd.f32 %v671, %v673
    %675 = vmatprep.subr.mxu0 %v451
    %676 = vmatpush1.msra.mxu0 %v450
    %677 = vmatprep.subr.mxu0 %v454
    %678 = vmatpush1.msra.mxu0 %v453
    %679 = vmatprep.subr.mxu0 %v457
    %680 = vmatpush1.msra.mxu0 %v456
    %681 = vmatprep.subr.mxu0 %v460
    %682 = vmatpush1.msra.mxu0 %v459
    %683 = vmatprep.subr.mxu0 %v463
    %684 = vmatpush1.msra.mxu0 %v462
    %685 = vmatprep.subr.mxu0 %v466
    %686 = vmatpush1.msra.mxu0 %v465
    %687 = vmatprep.subr.mxu0 %v469
    %688 = vmatpush1.msra.mxu0 %v468
    %689 = vmatprep.subr.mxu0 %v472
    %690 = vmatpush1.msra.mxu0 %v471
    %691 = vmatprep.subr.mxu0 %v475
    %692 = vmatpush1.msra.mxu0 %v474
    %693 = vmatprep.subr.mxu0 %v478
    %694 = vmatpush1.msra.mxu0 %v477
    %695 = vmatprep.subr.mxu0 %v481
    %696 = vmatpush1.msra.mxu0 %v480
    %697 = vmatprep.subr.mxu0 %v484
    %698 = vmatpush1.msra.mxu0 %v483
    %699 = vmatprep.subr.mxu0 %v487
    %700 = vmatpush1.msra.mxu0 %v486
    %701 = vmatprep.subr.mxu0 %v490
    %702 = vmatpush1.msra.mxu0 %v489
    %703 = vmatprep.subr.mxu0 %v493
    %704 = vmatpush1.msra.mxu0 %v492
    %705 = vmatprep.subr.mxu0 %v496
    %706 = vmatpush1.msra.mxu0 %v495
    %707 = vmatprep.subr.mxu0 0.0
    %708 = vmatpush1.msra.mxu0 0.0
    %709 = vmatprep.subr.mxu0 0.0
    %710 = vmatpush1.msra.mxu0 0.0
    %711 = vmatprep.subr.mxu0 0.0
    %712 = vmatpush1.msra.mxu0 0.0
    %713 = vmatprep.subr.mxu0 0.0
    %714 = vmatpush1.msra.mxu0 0.0
    %715 = vmatprep.subr.mxu0 0.0
    %716 = vmatpush1.msra.mxu0 0.0
    %717 = vmatprep.subr.mxu0 0.0
    %718 = vmatpush1.msra.mxu0 0.0
    %719 = vmatprep.subr.mxu0 0.0
    %720 = vmatpush1.msra.mxu0 0.0
    %721 = vmatprep.subr.mxu0 0.0
    %722 = vmatpush1.msra.mxu0 0.0
    %723 = vmatprep.subr.mxu0 0.0
    %724 = vmatpush1.msra.mxu0 0.0
    %725 = vmatprep.subr.mxu0 0.0
    %726 = vmatpush1.msra.mxu0 0.0
    %727 = vmatprep.subr.mxu0 0.0
    %728 = vmatpush1.msra.mxu0 0.0
    %729 = vmatprep.subr.mxu0 0.0
    %730 = vmatpush1.msra.mxu0 0.0
    %731 = vmatprep.subr.mxu0 0.0
    %732 = vmatpush1.msra.mxu0 0.0
    %733 = vmatprep.subr.mxu0 0.0
    %734 = vmatpush1.msra.mxu0 0.0
    %735 = vmatprep.subr.mxu0 0.0
    %736 = vmatpush1.msra.mxu0 0.0
    %737 = vmatprep.subr.mxu0 0.0
    %738 = vmatpush1.msra.mxu0 0.0
    %739 = vmatprep.mubr.f32.mxu0 0.0
    %740 = vmatmul.mubr.f32.gmra.mrb[0].mxu0 %v674
    %v741 = vpop.f32.mrb[0].mxu0
    %v742 = vadd.f32 %v503, %v741
    %v743 = vpop.f32.mrb[0].mxu0
    %v744 = vadd.f32 %v507, %v743
    %745 = vdwg.mxu0
    %746 = vmatprep.subr.mxu0 0.0
    %747 = vmatpush1.msra.mxu0 %v452
    %748 = vmatprep.subr.mxu0 0.0
    %749 = vmatpush1.msra.mxu0 %v455
    %750 = vmatprep.subr.mxu0 0.0
    %751 = vmatpush1.msra.mxu0 %v458
    %752 = vmatprep.subr.mxu0 0.0
    %753 = vmatpush1.msra.mxu0 %v461
    %754 = vmatprep.subr.mxu0 0.0
    %755 = vmatpush1.msra.mxu0 %v464
    %756 = vmatprep.subr.mxu0 0.0
    %757 = vmatpush1.msra.mxu0 %v467
    %758 = vmatprep.subr.mxu0 0.0
    %759 = vmatpush1.msra.mxu0 %v470
    %760 = vmatprep.subr.mxu0 0.0
    %761 = vmatpush1.msra.mxu0 %v473
    %762 = vmatprep.subr.mxu0 0.0
    %763 = vmatpush1.msra.mxu0 %v476
    %764 = vmatprep.subr.mxu0 0.0
    %765 = vmatpush1.msra.mxu0 %v479
    %766 = vmatprep.subr.mxu0 0.0
    %767 = vmatpush1.msra.mxu0 %v482
    %768 = vmatprep.subr.mxu0 0.0
    %769 = vmatpush1.msra.mxu0 %v485
    %770 = vmatprep.subr.mxu0 0.0
    %771 = vmatpush1.msra.mxu0 %v488
    %772 = vmatprep.subr.mxu0 0.0
    %773 = vmatpush1.msra.mxu0 %v491
    %774 = vmatprep.subr.mxu0 0.0
    %775 = vmatpush1.msra.mxu0 %v494
    %776 = vmatprep.subr.mxu0 0.0
    %777 = vmatpush1.msra.mxu0 %v497
    %778 = vmatprep.subr.mxu0 0.0
    %779 = vmatpush1.msra.mxu0 0.0
    %780 = vmatprep.subr.mxu0 0.0
    %781 = vmatpush1.msra.mxu0 0.0
    %782 = vmatprep.subr.mxu0 0.0
    %783 = vmatpush1.msra.mxu0 0.0
    %784 = vmatprep.subr.mxu0 0.0
    %785 = vmatpush1.msra.mxu0 0.0
    %786 = vmatprep.subr.mxu0 0.0
    %787 = vmatpush1.msra.mxu0 0.0
    %788 = vmatprep.subr.mxu0 0.0
    %789 = vmatpush1.msra.mxu0 0.0
    %790 = vmatprep.subr.mxu0 0.0
    %791 = vmatpush1.msra.mxu0 0.0
    %792 = vmatprep.subr.mxu0 0.0
    %793 = vmatpush1.msra.mxu0 0.0
    %794 = vmatprep.subr.mxu0 0.0
    %795 = vmatpush1.msra.mxu0 0.0
    %796 = vmatprep.subr.mxu0 0.0
    %797 = vmatpush1.msra.mxu0 0.0
    %798 = vmatprep.subr.mxu0 0.0
    %799 = vmatpush1.msra.mxu0 0.0
    %800 = vmatprep.subr.mxu0 0.0
    %801 = vmatpush1.msra.mxu0 0.0
    %802 = vmatprep.subr.mxu0 0.0
    %803 = vmatpush1.msra.mxu0 0.0
    %804 = vmatprep.subr.mxu0 0.0
    %805 = vmatpush1.msra.mxu0 0.0
    %806 = vmatprep.subr.mxu0 0.0
    %807 = vmatpush1.msra.mxu0 0.0
    %808 = vmatprep.subr.mxu0 0.0
    %809 = vmatpush1.msra.mxu0 0.0
    %810 = vmatprep.mubr.f32.mxu0 0.0
    %811 = vmatmul.mubr.f32.gmra.mrb[0].mxu0 %v674
    %v812 = vpop.f32.mrb[0].mxu0
    %v813 = vadd.f32 %v511, %v812
    %v814 = vpop.f32.mrb[0].mxu0
    %815 = vdwg.mxu0
    %s816 = scalar_lea.vmem [#allocation2], 24
    %v817 = vld [vmem:[%s816] sm:$0xff]
    %v818 = vld [vmem:[%s816 + $0x8] sm:$0xff]
    %v819 = vld [vmem:[%s816 + $0x10] sm:$0xff]
    %v820 = vadd.f32 %v817, %v742
    %v821 = vadd.f32 %v818, %v744
    %v822 = vmul.f32 %v820, 0.5
    %v823 = vmul.f32 %v821, 0.5
    %v824 = vtanh.pop %v822
    %v825 = vtanh.pop %v823
    %v826 = vadd.f32 %v824, 1.0
    %v827 = vadd.f32 %v825, 1.0
    %v828 = vmul.f32 %v826, 0.5
    %v829 = vmul.f32 %v827, 0.5
    %v830 = vmul.f32 %v828, %v813
    %v831 = vadd.f32 %v819, %v830
    %v832 = vtanh.pop %v831
    %v833 = vsub.f32 %v674, %v832
    %v834 = vmul.f32 %v829, %v833
    %v835 = vadd.f32 %v832, %v834
    %836 = vmatprep.subr.mxu0 %v451
    %837 = vmatpush1.msra.mxu0 %v450
    %838 = vmatprep.subr.mxu0 %v454
    %839 = vmatpush1.msra.mxu0 %v453
    %840 = vmatprep.subr.mxu0 %v457
    %841 = vmatpush1.msra.mxu0 %v456
    %842 = vmatprep.subr.mxu0 %v460
    %843 = vmatpush1.msra.mxu0 %v459
    %844 = vmatprep.subr.mxu0 %v463
    %845 = vmatpush1.msra.mxu0 %v462
    %846 = vmatprep.subr.mxu0 %v466
    %847 = vmatpush1.msra.mxu0 %v465
    %848 = vmatprep.subr.mxu0 %v469
    %849 = vmatpush1.msra.mxu0 %v468
    %850 = vmatprep.subr.mxu0 %v472
    %851 = vmatpush1.msra.mxu0 %v471
    %852 = vmatprep.subr.mxu0 %v475
    %853 = vmatpush1.msra.mxu0 %v474
    %854 = vmatprep.subr.mxu0 %v478
    %855 = vmatpush1.msra.mxu0 %v477
    %856 = vmatprep.subr.mxu0 %v481
    %857 = vmatpush1.msra.mxu0 %v480
    %858 = vmatprep.subr.mxu0 %v484
    %859 = vmatpush1.msra.mxu0 %v483
    %860 = vmatprep.subr.mxu0 %v487
    %861 = vmatpush1.msra.mxu0 %v486
    %862 = vmatprep.subr.mxu0 %v490
    %863 = vmatpush1.msra.mxu0 %v489
    %864 = vmatprep.subr.mxu0 %v493
    %865 = vmatpush1.msra.mxu0 %v492
    %866 = vmatprep.subr.mxu0 %v496
    %867 = vmatpush1.msra.mxu0 %v495
    %868 = vmatprep.subr.mxu0 0.0
    %869 = vmatpush1.msra.mxu0 0.0
    %870 = vmatprep.subr.mxu0 0.0
    %871 = vmatpush1.msra.mxu0 0.0
    %872 = vmatprep.subr.mxu0 0.0
    %873 = vmatpush1.msra.mxu0 0.0
    %874 = vmatprep.subr.mxu0 0.0
    %875 = vmatpush1.msra.mxu0 0.0
    %876 = vmatprep.subr.mxu0 0.0
    %877 = vmatpush1.msra.mxu0 0.0
    %878 = vmatprep.subr.mxu0 0.0
    %879 = vmatpush1.msra.mxu0 0.0
    %880 = vmatprep.subr.mxu0 0.0
    %881 = vmatpush1.msra.mxu0 0.0
    %882 = vmatprep.subr.mxu0 0.0
    %883 = vmatpush1.msra.mxu0 0.0
    %884 = vmatprep.subr.mxu0 0.0
    %885 = vmatpush1.msra.mxu0 0.0
    %886 = vmatprep.subr.mxu0 0.0
    %887 = vmatpush1.msra.mxu0 0.0
    %888 = vmatprep.subr.mxu0 0.0
    %889 = vmatpush1.msra.mxu0 0.0
    %890 = vmatprep.subr.mxu0 0.0
    %891 = vmatpush1.msra.mxu0 0.0
    %892 = vmatprep.subr.mxu0 0.0
    %893 = vmatpush1.msra.mxu0 0.0
    %894 = vmatprep.subr.mxu0 0.0
    %895 = vmatpush1.msra.mxu0 0.0
    %896 = vmatprep.subr.mxu0 0.0
    %897 = vmatpush1.msra.mxu0 0.0
    %898 = vmatprep.subr.mxu0 0.0
    %899 = vmatpush1.msra.mxu0 0.0
    %900 = vmatprep.mubr.f32.mxu0 0.0
    %901 = vmatmul.mubr.f32.gmra.mrb[0].mxu0 %v835
    %v902 = vpop.f32.mrb[0].mxu0
    %v903 = vadd.f32 %v503, %v902
    %v904 = vpop.f32.mrb[0].mxu0
    %v905 = vadd.f32 %v507, %v904
    %906 = vdwg.mxu0
    %907 = vmatprep.subr.mxu0 0.0
    %908 = vmatpush1.msra.mxu0 %v452
    %909 = vmatprep.subr.mxu0 0.0
    %910 = vmatpush1.msra.mxu0 %v455
    %911 = vmatprep.subr.mxu0 0.0
    %912 = vmatpush1.msra.mxu0 %v458
    %913 = vmatprep.subr.mxu0 0.0
    %914 = vmatpush1.msra.mxu0 %v461
    %915 = vmatprep.subr.mxu0 0.0
    %916 = vmatpush1.msra.mxu0 %v464
    %917 = vmatprep.subr.mxu0 0.0
    %918 = vmatpush1.msra.mxu0 %v467
    %919 = vmatprep.subr.mxu0 0.0
    %920 = vmatpush1.msra.mxu0 %v470
    %921 = vmatprep.subr.mxu0 0.0
    %922 = vmatpush1.msra.mxu0 %v473
    %923 = vmatprep.subr.mxu0 0.0
    %924 = vmatpush1.msra.mxu0 %v476
    %925 = vmatprep.subr.mxu0 0.0
    %926 = vmatpush1.msra.mxu0 %v479
    %927 = vmatprep.subr.mxu0 0.0
    %928 = vmatpush1.msra.mxu0 %v482
    %929 = vmatprep.subr.mxu0 0.0
    %930 = vmatpush1.msra.mxu0 %v485
    %931 = vmatprep.subr.mxu0 0.0
    %932 = vmatpush1.msra.mxu0 %v488
    %933 = vmatprep.subr.mxu0 0.0
    %934 = vmatpush1.msra.mxu0 %v491
    %935 = vmatprep.subr.mxu0 0.0
    %936 = vmatpush1.msra.mxu0 %v494
    %937 = vmatprep.subr.mxu0 0.0
    %938 = vmatpush1.msra.mxu0 %v497
    %939 = vmatprep.subr.mxu0 0.0
    %940 = vmatpush1.msra.mxu0 0.0
    %941 = vmatprep.subr.mxu0 0.0
    %942 = vmatpush1.msra.mxu0 0.0
    %943 = vmatprep.subr.mxu0 0.0
    %944 = vmatpush1.msra.mxu0 0.0
    %945 = vmatprep.subr.mxu0 0.0
    %946 = vmatpush1.msra.mxu0 0.0
    %947 = vmatprep.subr.mxu0 0.0
    %948 = vmatpush1.msra.mxu0 0.0
    %949 = vmatprep.subr.mxu0 0.0
    %950 = vmatpush1.msra.mxu0 0.0
    %951 = vmatprep.subr.mxu0 0.0
    %952 = vmatpush1.msra.mxu0 0.0
    %953 = vmatprep.subr.mxu0 0.0
    %954 = vmatpush1.msra.mxu0 0.0
    %955 = vmatprep.subr.mxu0 0.0
    %956 = vmatpush1.msra.mxu0 0.0
    %957 = vmatprep.subr.mxu0 0.0
    %958 = vmatpush1.msra.mxu0 0.0
    %959 = vmatprep.subr.mxu0 0.0
    %960 = vmatpush1.msra.mxu0 0.0
    %961 = vmatprep.subr.mxu0 0.0
    %962 = vmatpush1.msra.mxu0 0.0
    %963 = vmatprep.subr.mxu0 0.0
    %964 = vmatpush1.msra.mxu0 0.0
    %965 = vmatprep.subr.mxu0 0.0
    %966 = vmatpush1.msra.mxu0 0.0
    %967 = vmatprep.subr.mxu0 0.0
    %968 = vmatpush1.msra.mxu0 0.0
    %969 = vmatprep.subr.mxu0 0.0
    %970 = vmatpush1.msra.mxu0 0.0
    %971 = vmatprep.mubr.f32.mxu0 0.0
    %972 = vmatmul.mubr.f32.gmra.mrb[0].mxu0 %v835
    %v973 = vpop.f32.mrb[0].mxu0
    %v974 = vadd.f32 %v511, %v973
    %v975 = vpop.f32.mrb[0].mxu0
    %976 = vdwg.mxu0
    %s977 = scalar_lea.vmem [#allocation2], 48
    %v978 = vld [vmem:[%s977] sm:$0xff]
    %v979 = vld [vmem:[%s977 + $0x8] sm:$0xff]
    %v980 = vld [vmem:[%s977 + $0x10] sm:$0xff]
    %v981 = vadd.f32 %v978, %v903
    %v982 = vadd.f32 %v979, %v905
    %v983 = vmul.f32 %v981, 0.5
    %v984 = vmul.f32 %v982, 0.5
    %v985 = vtanh.pop %v983
    %v986 = vtanh.pop %v984
    %v987 = vadd.f32 %v985, 1.0
    %v988 = vadd.f32 %v986, 1.0
    %v989 = vmul.f32 %v987, 0.5
    %v990 = vmul.f32 %v988, 0.5
    %v991 = vmul.f32 %v989, %v974
    %v992 = vadd.f32 %v980, %v991
    %v993 = vtanh.pop %v992
    %v994 = vsub.f32 %v835, %v993
    %v995 = vmul.f32 %v990, %v994
    %v996 = vadd.f32 %v993, %v995
    %997 = vmatprep.subr.mxu0 %v451
    %998 = vmatpush1.msra.mxu0 %v450
    %999 = vmatprep.subr.mxu0 %v454
    %1000 = vmatpush1.msra.mxu0 %v453
    %1001 = vmatprep.subr.mxu0 %v457
    %1002 = vmatpush1.msra.mxu0 %v456
    %1003 = vmatprep.subr.mxu0 %v460
    %1004 = vmatpush1.msra.mxu0 %v459
    %1005 = vmatprep.subr.mxu0 %v463
    %1006 = vmatpush1.msra.mxu0 %v462
    %1007 = vmatprep.subr.mxu0 %v466
    %1008 = vmatpush1.msra.mxu0 %v465
    %1009 = vmatprep.subr.mxu0 %v469
    %1010 = vmatpush1.msra.mxu0 %v468
    %1011 = vmatprep.subr.mxu0 %v472
    %1012 = vmatpush1.msra.mxu0 %v471
    %1013 = vmatprep.subr.mxu0 %v475
    %1014 = vmatpush1.msra.mxu0 %v474
    %1015 = vmatprep.subr.mxu0 %v478
    %1016 = vmatpush1.msra.mxu0 %v477
    %1017 = vmatprep.subr.mxu0 %v481
    %1018 = vmatpush1.msra.mxu0 %v480
    %1019 = vmatprep.subr.mxu0 %v484
    %1020 = vmatpush1.msra.mxu0 %v483
    %1021 = vmatprep.subr.mxu0 %v487
    %1022 = vmatpush1.msra.mxu0 %v486
    %1023 = vmatprep.subr.mxu0 %v490
    %1024 = vmatpush1.msra.mxu0 %v489
    %1025 = vmatprep.subr.mxu0 %v493
    %1026 = vmatpush1.msra.mxu0 %v492
    %1027 = vmatprep.subr.mxu0 %v496
    %1028 = vmatpush1.msra.mxu0 %v495
    %1029 = vmatprep.subr.mxu0 0.0
    %1030 = vmatpush1.msra.mxu0 0.0
    %1031 = vmatprep.subr.mxu0 0.0
    %1032 = vmatpush1.msra.mxu0 0.0
    %1033 = vmatprep.subr.mxu0 0.0
    %1034 = vmatpush1.msra.mxu0 0.0
    %1035 = vmatprep.subr.mxu0 0.0
    %1036 = vmatpush1.msra.mxu0 0.0
    %1037 = vmatprep.subr.mxu0 0.0
    %1038 = vmatpush1.msra.mxu0 0.0
    %1039 = vmatprep.subr.mxu0 0.0
    %1040 = vmatpush1.msra.mxu0 0.0
    %1041 = vmatprep.subr.mxu0 0.0
    %1042 = vmatpush1.msra.mxu0 0.0
    %1043 = vmatprep.subr.mxu0 0.0
    %1044 = vmatpush1.msra.mxu0 0.0
    %1045 = vmatprep.subr.mxu0 0.0
    %1046 = vmatpush1.msra.mxu0 0.0
    %1047 = vmatprep.subr.mxu0 0.0
    %1048 = vmatpush1.msra.mxu0 0.0
    %1049 = vmatprep.subr.mxu0 0.0
    %1050 = vmatpush1.msra.mxu0 0.0
    %1051 = vmatprep.subr.mxu0 0.0
    %1052 = vmatpush1.msra.mxu0 0.0
    %1053 = vmatprep.subr.mxu0 0.0
    %1054 = vmatpush1.msra.mxu0 0.0
    %1055 = vmatprep.subr.mxu0 0.0
    %1056 = vmatpush1.msra.mxu0 0.0
    %1057 = vmatprep.subr.mxu0 0.0
    %1058 = vmatpush1.msra.mxu0 0.0
    %1059 = vmatprep.subr.mxu0 0.0
    %1060 = vmatpush1.msra.mxu0 0.0
    %1061 = vmatprep.mubr.f32.mxu0 0.0
    %1062 = vmatmul.mubr.f32.gmra.mrb[0].mxu0 %v996
    %v1063 = vpop.f32.mrb[0].mxu0
    %v1064 = vadd.f32 %v503, %v1063
    %v1065 = vpop.f32.mrb[0].mxu0
    %v1066 = vadd.f32 %v507, %v1065
    %1067 = vdwg.mxu0
    %1068 = vmatprep.subr.mxu0 0.0
    %1069 = vmatpush1.msra.mxu0 %v452
    %1070 = vmatprep.subr.mxu0 0.0
    %1071 = vmatpush1.msra.mxu0 %v455
    %1072 = vmatprep.subr.mxu0 0.0
    %1073 = vmatpush1.msra.mxu0 %v458
    %1074 = vmatprep.subr.mxu0 0.0
    %1075 = vmatpush1.msra.mxu0 %v461
    %1076 = vmatprep.subr.mxu0 0.0
    %1077 = vmatpush1.msra.mxu0 %v464
    %1078 = vmatprep.subr.mxu0 0.0
    %1079 = vmatpush1.msra.mxu0 %v467
    %1080 = vmatprep.subr.mxu0 0.0
    %1081 = vmatpush1.msra.mxu0 %v470
    %1082 = vmatprep.subr.mxu0 0.0
    %1083 = vmatpush1.msra.mxu0 %v473
    %1084 = vmatprep.subr.mxu0 0.0
    %1085 = vmatpush1.msra.mxu0 %v476
    %1086 = vmatprep.subr.mxu0 0.0
    %1087 = vmatpush1.msra.mxu0 %v479
    %1088 = vmatprep.subr.mxu0 0.0
    %1089 = vmatpush1.msra.mxu0 %v482
    %1090 = vmatprep.subr.mxu0 0.0
    %1091 = vmatpush1.msra.mxu0 %v485
    %1092 = vmatprep.subr.mxu0 0.0
    %1093 = vmatpush1.msra.mxu0 %v488
    %1094 = vmatprep.subr.mxu0 0.0
    %1095 = vmatpush1.msra.mxu0 %v491
    %1096 = vmatprep.subr.mxu0 0.0
    %1097 = vmatpush1.msra.mxu0 %v494
    %1098 = vmatprep.subr.mxu0 0.0
    %1099 = vmatpush1.msra.mxu0 %v497
    %1100 = vmatprep.subr.mxu0 0.0
    %1101 = vmatpush1.msra.mxu0 0.0
    %1102 = vmatprep.subr.mxu0 0.0
    %1103 = vmatpush1.msra.mxu0 0.0
    %1104 = vmatprep.subr.mxu0 0.0
    %1105 = vmatpush1.msra.mxu0 0.0
    %1106 = vmatprep.subr.mxu0 0.0
    %1107 = vmatpush1.msra.mxu0 0.0
    %1108 = vmatprep.subr.mxu0 0.0
    %1109 = vmatpush1.msra.mxu0 0.0
    %1110 = vmatprep.subr.mxu0 0.0
    %1111 = vmatpush1.msra.mxu0 0.0
    %1112 = vmatprep.subr.mxu0 0.0
    %1113 = vmatpush1.msra.mxu0 0.0
    %1114 = vmatprep.subr.mxu0 0.0
    %1115 = vmatpush1.msra.mxu0 0.0
    %1116 = vmatprep.subr.mxu0 0.0
    %1117 = vmatpush1.msra.mxu0 0.0
    %1118 = vmatprep.subr.mxu0 0.0
    %1119 = vmatpush1.msra.mxu0 0.0
    %1120 = vmatprep.subr.mxu0 0.0
    %1121 = vmatpush1.msra.mxu0 0.0
    %1122 = vmatprep.subr.mxu0 0.0
    %1123 = vmatpush1.msra.mxu0 0.0
    %1124 = vmatprep.subr.mxu0 0.0
    %1125 = vmatpush1.msra.mxu0 0.0
    %1126 = vmatprep.subr.mxu0 0.0
    %1127 = vmatpush1.msra.mxu0 0.0
    %1128 = vmatprep.subr.mxu0 0.0
    %1129 = vmatpush1.msra.mxu0 0.0
    %1130 = vmatprep.subr.mxu0 0.0
    %1131 = vmatpush1.msra.mxu0 0.0
    %1132 = vmatprep.mubr.f32.mxu0 0.0
    %1133 = vmatmul.mubr.f32.gmra.mrb[0].mxu0 %v996
    %v1134 = vpop.f32.mrb[0].mxu0
    %v1135 = vadd.f32 %v511, %v1134
    %v1136 = vpop.f32.mrb[0].mxu0
    %1137 = vdwg.mxu0
    %s1138 = scalar_lea.vmem [#allocation2], 72
    %v1139 = vld [vmem:[%s1138] sm:$0xff]
    %v1140 = vld [vmem:[%s1138 + $0x8] sm:$0xff]
    %v1141 = vld [vmem:[%s1138 + $0x10] sm:$0xff]
    %v1142 = vadd.f32 %v1139, %v1064
    %v1143 = vadd.f32 %v1140, %v1066
    %v1144 = vmul.f32 %v1142, 0.5
    %v1145 = vmul.f32 %v1143, 0.5
    %v1146 = vtanh.pop %v1144
    %v1147 = vtanh.pop %v1145
    %v1148 = vadd.f32 %v1146, 1.0
    %v1149 = vadd.f32 %v1147, 1.0
    %v1150 = vmul.f32 %v1148, 0.5
    %v1151 = vmul.f32 %v1149, 0.5
    %v1152 = vmul.f32 %v1150, %v1135
    %v1153 = vadd.f32 %v1141, %v1152
    %v1154 = vtanh.pop %v1153
    %v1155 = vsub.f32 %v996, %v1154
    %v1156 = vmul.f32 %v1151, %v1155
    %v1157 = vadd.f32 %v1154, %v1156
    %1158 = vmatprep.subr.mxu0 %v451
    %1159 = vmatpush1.msra.mxu0 %v450
    %1160 = vmatprep.subr.mxu0 %v454
    %1161 = vmatpush1.msra.mxu0 %v453
    %1162 = vmatprep.subr.mxu0 %v457
    %1163 = vmatpush1.msra.mxu0 %v456
    %1164 = vmatprep.subr.mxu0 %v460
    %1165 = vmatpush1.msra.mxu0 %v459
    %1166 = vmatprep.subr.mxu0 %v463
    %1167 = vmatpush1.msra.mxu0 %v462
    %1168 = vmatprep.subr.mxu0 %v466
    %1169 = vmatpush1.msra.mxu0 %v465
    %1170 = vmatprep.subr.mxu0 %v469
    %1171 = vmatpush1.msra.mxu0 %v468
    %1172 = vmatprep.subr.mxu0 %v472
    %1173 = vmatpush1.msra.mxu0 %v471
    %1174 = vmatprep.subr.mxu0 %v475
    %1175 = vmatpush1.msra.mxu0 %v474
    %1176 = vmatprep.subr.mxu0 %v478
    %1177 = vmatpush1.msra.mxu0 %v477
    %1178 = vmatprep.subr.mxu0 %v481
    %1179 = vmatpush1.msra.mxu0 %v480
    %1180 = vmatprep.subr.mxu0 %v484
    %1181 = vmatpush1.msra.mxu0 %v483
    %1182 = vmatprep.subr.mxu0 %v487
    %1183 = vmatpush1.msra.mxu0 %v486
    %1184 = vmatprep.subr.mxu0 %v490
    %1185 = vmatpush1.msra.mxu0 %v489
    %1186 = vmatprep.subr.mxu0 %v493
    %1187 = vmatpush1.msra.mxu0 %v492
    %1188 = vmatprep.subr.mxu0 %v496
    %1189 = vmatpush1.msra.mxu0 %v495
    %1190 = vmatprep.subr.mxu0 0.0
    %1191 = vmatpush1.msra.mxu0 0.0
    %1192 = vmatprep.subr.mxu0 0.0
    %1193 = vmatpush1.msra.mxu0 0.0
    %1194 = vmatprep.subr.mxu0 0.0
    %1195 = vmatpush1.msra.mxu0 0.0
    %1196 = vmatprep.subr.mxu0 0.0
    %1197 = vmatpush1.msra.mxu0 0.0
    %1198 = vmatprep.subr.mxu0 0.0
    %1199 = vmatpush1.msra.mxu0 0.0
    %1200 = vmatprep.subr.mxu0 0.0
    %1201 = vmatpush1.msra.mxu0 0.0
    %1202 = vmatprep.subr.mxu0 0.0
    %1203 = vmatpush1.msra.mxu0 0.0
    %1204 = vmatprep.subr.mxu0 0.0
    %1205 = vmatpush1.msra.mxu0 0.0
    %1206 = vmatprep.subr.mxu0 0.0
    %1207 = vmatpush1.msra.mxu0 0.0
    %1208 = vmatprep.subr.mxu0 0.0
    %1209 = vmatpush1.msra.mxu0 0.0
    %1210 = vmatprep.subr.mxu0 0.0
    %1211 = vmatpush1.msra.mxu0 0.0
    %1212 = vmatprep.subr.mxu0 0.0
    %1213 = vmatpush1.msra.mxu0 0.0
    %1214 = vmatprep.subr.mxu0 0.0
    %1215 = vmatpush1.msra.mxu0 0.0
    %1216 = vmatprep.subr.mxu0 0.0
    %1217 = vmatpush1.msra.mxu0 0.0
    %1218 = vmatprep.subr.mxu0 0.0
    %1219 = vmatpush1.msra.mxu0 0.0
    %1220 = vmatprep.subr.mxu0 0.0
    %1221 = vmatpush1.msra.mxu0 0.0
    %1222 = vmatprep.mubr.f32.mxu0 0.0
    %1223 = vmatmul.mubr.f32.gmra.mrb[0].mxu0 %v1157
    %v1224 = vpop.f32.mrb[0].mxu0
    %v1225 = vadd.f32 %v503, %v1224
    %v1226 = vpop.f32.mrb[0].mxu0
    %v1227 = vadd.f32 %v507, %v1226
    %1228 = vdwg.mxu0
    %1229 = vmatprep.subr.mxu0 0.0
    %1230 = vmatpush1.msra.mxu0 %v452
    %1231 = vmatprep.subr.mxu0 0.0
    %1232 = vmatpush1.msra.mxu0 %v455
    %1233 = vmatprep.subr.mxu0 0.0
    %1234 = vmatpush1.msra.mxu0 %v458
    %1235 = vmatprep.subr.mxu0 0.0
    %1236 = vmatpush1.msra.mxu0 %v461
    %1237 = vmatprep.subr.mxu0 0.0
    %1238 = vmatpush1.msra.mxu0 %v464
    %1239 = vmatprep.subr.mxu0 0.0
    %1240 = vmatpush1.msra.mxu0 %v467
    %1241 = vmatprep.subr.mxu0 0.0
    %1242 = vmatpush1.msra.mxu0 %v470
    %1243 = vmatprep.subr.mxu0 0.0
    %1244 = vmatpush1.msra.mxu0 %v473
    %1245 = vmatprep.subr.mxu0 0.0
    %1246 = vmatpush1.msra.mxu0 %v476
    %1247 = vmatprep.subr.mxu0 0.0
    %1248 = vmatpush1.msra.mxu0 %v479
    %1249 = vmatprep.subr.mxu0 0.0
    %1250 = vmatpush1.msra.mxu0 %v482
    %1251 = vmatprep.subr.mxu0 0.0
    %1252 = vmatpush1.msra.mxu0 %v485
    %1253 = vmatprep.subr.mxu0 0.0
    %1254 = vmatpush1.msra.mxu0 %v488
    %1255 = vmatprep.subr.mxu0 0.0
    %1256 = vmatpush1.msra.mxu0 %v491
    %1257 = vmatprep.subr.mxu0 0.0
    %1258 = vmatpush1.msra.mxu0 %v494
    %1259 = vmatprep.subr.mxu0 0.0
    %1260 = vmatpush1.msra.mxu0 %v497
    %1261 = vmatprep.subr.mxu0 0.0
    %1262 = vmatpush1.msra.mxu0 0.0
    %1263 = vmatprep.subr.mxu0 0.0
    %1264 = vmatpush1.msra.mxu0 0.0
    %1265 = vmatprep.subr.mxu0 0.0
    %1266 = vmatpush1.msra.mxu0 0.0
    %1267 = vmatprep.subr.mxu0 0.0
    %1268 = vmatpush1.msra.mxu0 0.0
    %1269 = vmatprep.subr.mxu0 0.0
    %1270 = vmatpush1.msra.mxu0 0.0
    %1271 = vmatprep.subr.mxu0 0.0
    %1272 = vmatpush1.msra.mxu0 0.0
    %1273 = vmatprep.subr.mxu0 0.0
    %1274 = vmatpush1.msra.mxu0 0.0
    %1275 = vmatprep.subr.mxu0 0.0
    %1276 = vmatpush1.msra.mxu0 0.0
    %1277 = vmatprep.subr.mxu0 0.0
    %1278 = vmatpush1.msra.mxu0 0.0
    %1279 = vmatprep.subr.mxu0 0.0
    %1280 = vmatpush1.msra.mxu0 0.0
    %1281 = vmatprep.subr.mxu0 0.0
    %1282 = vmatpush1.msra.mxu0 0.0
    %1283 = vmatprep.subr.mxu0 0.0
    %1284 = vmatpush1.msra.mxu0 0.0
    %1285 = vmatprep.subr.mxu0 0.0
    %1286 = vmatpush1.msra.mxu0 0.0
    %1287 = vmatprep.subr.mxu0 0.0
    %1288 = vmatpush1.msra.mxu0 0.0
    %1289 = vmatprep.subr.mxu0 0.0
    %1290 = vmatpush1.msra.mxu0 0.0
    %1291 = vmatprep.subr.mxu0 0.0
    %1292 = vmatpush1.msra.mxu0 0.0
    %1293 = vmatprep.mubr.f32.mxu0 0.0
    %1294 = vmatmul.mubr.f32.gmra.mrb[0].mxu0 %v1157
    %v1295 = vpop.f32.mrb[0].mxu0
    %v1296 = vadd.f32 %v511, %v1295
    %v1297 = vpop.f32.mrb[0].mxu0
    %1298 = vdwg.mxu0
    %s1299 = scalar_lea.vmem [#allocation2], 96
    %v1300 = vld [vmem:[%s1299] sm:$0xff]
    %v1301 = vld [vmem:[%s1299 + $0x8] sm:$0xff]
    %v1302 = vld [vmem:[%s1299 + $0x10] sm:$0xff]
    %v1303 = vadd.f32 %v1300, %v1225
    %v1304 = vadd.f32 %v1301, %v1227
    %v1305 = vmul.f32 %v1303, 0.5
    %v1306 = vmul.f32 %v1304, 0.5
    %v1307 = vtanh.pop %v1305
    %v1308 = vtanh.pop %v1306
    %v1309 = vadd.f32 %v1307, 1.0
    %v1310 = vadd.f32 %v1308, 1.0
    %v1311 = vmul.f32 %v1309, 0.5
    %v1312 = vmul.f32 %v1310, 0.5
    %v1313 = vmul.f32 %v1311, %v1296
    %v1314 = vadd.f32 %v1302, %v1313
    %v1315 = vtanh.pop %v1314
    %v1316 = vsub.f32 %v1157, %v1315
    %v1317 = vmul.f32 %v1312, %v1316
    %v1318 = vadd.f32 %v1315, %v1317
    %1319 = vst [vmem:[%s7] sm:$0xff] %v1318
    // Predicated region
    $region42: #{_lambda_.1} parent=1 // pred_check
      _
    $region43: #{_lambda_.1} parent=1 // pred_check_branch
      %1321 = sbr.rel (0) target = $region45
    $region44: #{_lambda_.1} parent=1 // pred_region
      _
    $region45: #{_lambda_.1} parent=1 // pred_fallthru
      _
    // Predicated region
    $region46: #{_lambda_.1} parent=1 // pred_check
      _
    $region47: #{_lambda_.1} parent=1 // pred_check_branch
      %1323 = sbr.rel (0) target = $region49
    $region48: #{_lambda_.1} parent=1 // pred_region
      _
    $region49: #{_lambda_.1} parent=1 // pred_fallthru
      _
    %1324 = vsyncpa [#allocation4], 1
    %1325 = vsyncpa [#allocation6], 1

</llo_original>
